<compile_context>
chip_gen: v5e
topology: v5e:2x2
jax: 0.10.0
libtpu: 0.0.40
codegen_flags: <defaults>
</compile_context>

<pallas_src>
import jax
import jax.numpy as jnp
from jax.experimental import pallas as pl
from jax.experimental.pallas import tpu as pltpu


def _m2a_motion_kernel(x_ref, wd_ref, bd_ref, wu_ref, bu_ref, o_ref):
    """One (batch, hw_tile) block: fused conv_down -> Motion -> conv_up ->
    sigmoid -> residual gate, for all T frames of the segment at once.

    x_ref / o_ref : (1, T, C, S)   (S = hw tile, lane axis)
    wd_ref        : (rsize, C)     conv_down weight
    bd_ref        : (rsize, 1)     conv_down bias
    wu_ref        : (C, rsize)     conv_up weight
    bu_ref        : (C, 1)         conv_up bias
    """
    T = x_ref.shape[1]

    wd = wd_ref[...].astype(jnp.float32)
    bd = bd_ref[...].astype(jnp.float32)
    wu = wu_ref[...].astype(jnp.float32)
    bu = bu_ref[...].astype(jnp.float32)

    # conv_down for every frame of the segment (x DMA'd from HBM once).
    xd = []
    for t in range(T):                      # T is small & static -> unrolled
        x_t = x_ref[0, t].astype(jnp.float32)               # (C, S)
        xd.append(jnp.dot(wd, x_t, preferred_element_type=jnp.float32) + bd)

    # Motion (left shift w/ zero pad, minus identity), conv_up, sigmoid gate,
    # residual multiply-add.
    for t in range(T):
        x_t = x_ref[0, t].astype(jnp.float32)                # shortcut frame
        nxt = xd[t + 1] if (t + 1) < T else jnp.zeros_like(xd[t])
        diff = nxt - xd[t]                                   # (rsize, S)
        y = jnp.dot(wu, diff, preferred_element_type=jnp.float32) + bu
        gate = 1.0 / (1.0 + jnp.exp(-y))                     # sigmoid (EUP)
        o_ref[0, t] = (gate * x_t + x_t).astype(o_ref.dtype)


def _pick_hw_block(hw, n_segment, c, itemsize, target_bytes=4 * 1024 * 1024):
    """Largest lane-tile: multiple of 128 dividing hw, under a VMEM budget."""
    per_lane = n_segment * c * itemsize
    max_lanes = max(128, (target_bytes // per_lane) // 128 * 128)
    if hw <= max_lanes or hw % 128 != 0:
        return hw
    for cand in range(min(max_lanes, hw), 127, -128):
        if hw % cand == 0:
            return cand
    return hw


def m2a_motion(x_nchw, w_down, b_down, w_up, b_up, *, n_segment):
    """Fused M2A forward (blocks=[('motion','')]).

    x_nchw : (NT, C, H, W)
    w_down : (rsize, C),  b_down: (rsize,)
    w_up   : (C, rsize),  b_up  : (C,)
    """
    nt, c, h, w = x_nchw.shape
    assert nt % n_segment == 0
    n_batch = nt // n_segment
    hw = h * w
    rsize = w_down.shape[0]
    assert w_down.shape == (rsize, c) and w_up.shape == (c, rsize)

    # Pure reshape: NCHW stays NCHW, '(b t) c h w -> b t c (h w)' with b major.
    x = x_nchw.reshape(n_batch, n_segment, c, hw)
    bd = b_down.reshape(rsize, 1)
    bu = b_up.reshape(c, 1)

    hw_block = _pick_hw_block(hw, n_segment, c, x_nchw.dtype.itemsize)
    grid = (n_batch, hw // hw_block)
    seg_block = (1, n_segment, c, hw_block)

    out = pl.pallas_call(
        _m2a_motion_kernel,
        out_shape=jax.ShapeDtypeStruct((n_batch, n_segment, c, hw), x_nchw.dtype),
        grid_spec=pltpu.PrefetchScalarGridSpec(
            num_scalar_prefetch=0,
            grid=grid,
            in_specs=[
                pl.BlockSpec(seg_block, lambda b, s: (b, 0, 0, s)),
                pl.BlockSpec((rsize, c), lambda b, s: (0, 0)),
                pl.BlockSpec((rsize, 1), lambda b, s: (0, 0)),
                pl.BlockSpec((c, rsize), lambda b, s: (0, 0)),
                pl.BlockSpec((c, 1), lambda b, s: (0, 0)),
            ],
            out_specs=pl.BlockSpec(seg_block, lambda b, s: (b, 0, 0, s)),
        ),
        compiler_params=pltpu.CompilerParams(
            dimension_semantics=("parallel", "parallel"),
            vmem_limit_bytes=48 * 1024 * 1024,
        ),
    )(x, w_down, bd, w_up, bu)

    return out.reshape(nt, c, h, w)


def _reference(x_nchw, w_down, b_down, w_up, b_up, *, n_segment):
    """Pure-JAX reference mirroring the PyTorch M2A forward with a Motion block."""
    nt, c, h, w = x_nchw.shape
    n_batch = nt // n_segment
    shortcut = x_nchw
    # conv_down (1x1)
    xd = jnp.einsum('oc,nchw->nohw', w_down, x_nchw) + b_down[None, :, None, None]
    # Motion: rearrange '(b t) c h w -> b t c h w', left shift (zero pad) - identity
    xd5 = xd.reshape(n_batch, n_segment, *xd.shape[1:])
    pad = jnp.zeros_like(xd5[:, :1])
    motion = (jnp.concatenate([xd5[:, 1:], pad], axis=1) - xd5).reshape(xd.shape)
    # conv_up (1x1), sigmoid gate, residual
    y = jnp.einsum('oc,nchw->nohw', w_up, motion) + b_up[None, :, None, None]
    gate = jax.nn.sigmoid(y)
    return (gate * shortcut + shortcut).astype(x_nchw.dtype)


if __name__ == "__main__":
    n_segment, n_div = 4, 4
    in_channels, h, w = 32, 16, 16
    n_batch = 2
    nt = n_batch * n_segment
    rsize = in_channels // n_div

    key = jax.random.PRNGKey(0)
    kx, k1, k2, k3, k4 = jax.random.split(key, 5)
    x = jax.random.normal(kx, (nt, in_channels, h, w), dtype=jnp.float32)
    w_down = jax.random.normal(k1, (rsize, in_channels), dtype=jnp.float32) * 0.1
    b_down = jax.random.normal(k2, (rsize,), dtype=jnp.float32) * 0.1
    w_up = jax.random.normal(k3, (in_channels, rsize), dtype=jnp.float32) * 0.1
    b_up = jax.random.normal(k4, (in_channels,), dtype=jnp.float32) * 0.1

    y = m2a_motion(x, w_down, b_down, w_up, b_up, n_segment=n_segment)
    y = jax.block_until_ready(y)

    y_ref = _reference(x, w_down, b_down, w_up, b_up, n_segment=n_segment)
    assert y.shape == x.shape
    assert jnp.allclose(y, y_ref, atol=1e-4, rtol=1e-4), float(
        jnp.max(jnp.abs(y - y_ref)))

    print("KERNEL_OK")
</pallas_src>

<mosaic_0001>
module attributes {stable_mosaic.version = 11 : i64} {
  func.func @_m2a_motion_kernel(%arg0: i32, %arg1: i32, %arg2: memref<1x4x32x256xf32, #tpu.memory_space<vmem>>, %arg3: memref<8x32xf32, #tpu.memory_space<vmem>>, %arg4: memref<8x1xf32, #tpu.memory_space<vmem>>, %arg5: memref<32x8xf32, #tpu.memory_space<vmem>>, %arg6: memref<32x1xf32, #tpu.memory_space<vmem>>, %arg7: memref<1x4x32x256xf32, #tpu.memory_space<vmem>>) attributes {dimension_semantics = [#tpu.dimension_semantics<parallel>, #tpu.dimension_semantics<parallel>], iteration_bounds = array<i64: 2, 1>, scalar_prefetch = 0 : i64, scratch_operands = 0 : i64, tpu.core_type = #tpu.core_type<tc>, window_params = [{transform_indices = @transform_0, window_bounds = array<i64: 1, 4, 32, 256>}, {pipeline_mode = #tpu.pipeline_mode<synchronous>, transform_indices = @transform_1, window_bounds = array<i64: 8, 32>}, {pipeline_mode = #tpu.pipeline_mode<synchronous>, transform_indices = @transform_2, window_bounds = array<i64: 8, 1>}, {pipeline_mode = #tpu.pipeline_mode<synchronous>, transform_indices = @transform_3, window_bounds = array<i64: 32, 8>}, {pipeline_mode = #tpu.pipeline_mode<synchronous>, transform_indices = @transform_4, window_bounds = array<i64: 32, 1>}, {transform_indices = @transform_5, window_bounds = array<i64: 1, 4, 32, 256>}]} {
    %c0 = arith.constant 0 : index
    %c0_0 = arith.constant 0 : index
    %0 = vector.load %arg3[%c0, %c0_0] : memref<8x32xf32, #tpu.memory_space<vmem>>, vector<8x32xf32>
    %c0_1 = arith.constant 0 : index
    %c0_2 = arith.constant 0 : index
    %1 = vector.load %arg4[%c0_1, %c0_2] : memref<8x1xf32, #tpu.memory_space<vmem>>, vector<8x1xf32>
    %c0_3 = arith.constant 0 : index
    %c0_4 = arith.constant 0 : index
    %2 = vector.load %arg5[%c0_3, %c0_4] : memref<32x8xf32, #tpu.memory_space<vmem>>, vector<32x8xf32>
    %c0_5 = arith.constant 0 : index
    %c0_6 = arith.constant 0 : index
    %3 = vector.load %arg6[%c0_5, %c0_6] : memref<32x1xf32, #tpu.memory_space<vmem>>, vector<32x1xf32>
    %c0_7 = arith.constant 0 : index
    %c0_8 = arith.constant 0 : index
    %c0_9 = arith.constant 0 : index
    %c0_10 = arith.constant 0 : index
    %4 = vector.load %arg2[%c0_7, %c0_8, %c0_9, %c0_10] : memref<1x4x32x256xf32, #tpu.memory_space<vmem>>, vector<1x1x32x256xf32>
    %5 = vector.shape_cast %4 : vector<1x1x32x256xf32> to vector<32x256xf32>
    %cst = arith.constant dense<0.000000e+00> : vector<8x256xf32>
    %6 = tpu.matmul %0, %5, %cst {dimension_numbers = #tpu.dot_dimension_numbers<[1], [0], [0], [1], [0, 0, 1, 1], [], []>} : vector<8x32xf32>, vector<32x256xf32>, vector<8x256xf32> -> vector<8x256xf32>
    %7 = vector.broadcast %1 : vector<8x1xf32> to vector<8x256xf32>
    %8 = arith.addf %6, %7 : vector<8x256xf32>
    %c0_11 = arith.constant 0 : index
    %c1 = arith.constant 1 : index
    %c0_12 = arith.constant 0 : index
    %c0_13 = arith.constant 0 : index
    %9 = vector.load %arg2[%c0_11, %c1, %c0_12, %c0_13] : memref<1x4x32x256xf32, #tpu.memory_space<vmem>>, vector<1x1x32x256xf32>
    %10 = vector.shape_cast %9 : vector<1x1x32x256xf32> to vector<32x256xf32>
    %cst_14 = arith.constant dense<0.000000e+00> : vector<8x256xf32>
    %11 = tpu.matmul %0, %10, %cst_14 {dimension_numbers = #tpu.dot_dimension_numbers<[1], [0], [0], [1], [0, 0, 1, 1], [], []>} : vector<8x32xf32>, vector<32x256xf32>, vector<8x256xf32> -> vector<8x256xf32>
    %12 = vector.broadcast %1 : vector<8x1xf32> to vector<8x256xf32>
    %13 = arith.addf %11, %12 : vector<8x256xf32>
    %c0_15 = arith.constant 0 : index
    %c2 = arith.constant 2 : index
    %c0_16 = arith.constant 0 : index
    %c0_17 = arith.constant 0 : index
    %14 = vector.load %arg2[%c0_15, %c2, %c0_16, %c0_17] : memref<1x4x32x256xf32, #tpu.memory_space<vmem>>, vector<1x1x32x256xf32>
    %15 = vector.shape_cast %14 : vector<1x1x32x256xf32> to vector<32x256xf32>
    %cst_18 = arith.constant dense<0.000000e+00> : vector<8x256xf32>
    %16 = tpu.matmul %0, %15, %cst_18 {dimension_numbers = #tpu.dot_dimension_numbers<[1], [0], [0], [1], [0, 0, 1, 1], [], []>} : vector<8x32xf32>, vector<32x256xf32>, vector<8x256xf32> -> vector<8x256xf32>
    %17 = vector.broadcast %1 : vector<8x1xf32> to vector<8x256xf32>
    %18 = arith.addf %16, %17 : vector<8x256xf32>
    %c0_19 = arith.constant 0 : index
    %c3 = arith.constant 3 : index
    %c0_20 = arith.constant 0 : index
    %c0_21 = arith.constant 0 : index
    %19 = vector.load %arg2[%c0_19, %c3, %c0_20, %c0_21] : memref<1x4x32x256xf32, #tpu.memory_space<vmem>>, vector<1x1x32x256xf32>
    %20 = vector.shape_cast %19 : vector<1x1x32x256xf32> to vector<32x256xf32>
    %cst_22 = arith.constant dense<0.000000e+00> : vector<8x256xf32>
    %21 = tpu.matmul %0, %20, %cst_22 {dimension_numbers = #tpu.dot_dimension_numbers<[1], [0], [0], [1], [0, 0, 1, 1], [], []>} : vector<8x32xf32>, vector<32x256xf32>, vector<8x256xf32> -> vector<8x256xf32>
    %22 = vector.broadcast %1 : vector<8x1xf32> to vector<8x256xf32>
    %23 = arith.addf %21, %22 : vector<8x256xf32>
    %c0_23 = arith.constant 0 : index
    %c0_24 = arith.constant 0 : index
    %c0_25 = arith.constant 0 : index
    %c0_26 = arith.constant 0 : index
    %24 = vector.load %arg2[%c0_23, %c0_24, %c0_25, %c0_26] : memref<1x4x32x256xf32, #tpu.memory_space<vmem>>, vector<1x1x32x256xf32>
    %25 = vector.shape_cast %24 : vector<1x1x32x256xf32> to vector<32x256xf32>
    %26 = arith.subf %13, %8 : vector<8x256xf32>
    %cst_27 = arith.constant dense<0.000000e+00> : vector<32x256xf32>
    %27 = tpu.matmul %2, %26, %cst_27 {dimension_numbers = #tpu.dot_dimension_numbers<[1], [0], [0], [1], [0, 0, 1, 1], [], []>} : vector<32x8xf32>, vector<8x256xf32>, vector<32x256xf32> -> vector<32x256xf32>
    %28 = vector.broadcast %3 : vector<32x1xf32> to vector<32x256xf32>
    %29 = arith.addf %27, %28 : vector<32x256xf32>
    %cst_28 = arith.constant 0.000000e+00 : f32
    %30 = vector.broadcast %cst_28 : f32 to vector<32x256xf32>
    %31 = arith.subf %30, %29 : vector<32x256xf32>
    %32 = math.exp %31 : vector<32x256xf32>
    %cst_29 = arith.constant 1.000000e+00 : f32
    %33 = vector.broadcast %cst_29 : f32 to vector<32x256xf32>
    %34 = arith.addf %33, %32 : vector<32x256xf32>
    %cst_30 = arith.constant 1.000000e+00 : f32
    %35 = vector.broadcast %cst_30 : f32 to vector<32x256xf32>
    %36 = arith.divf %35, %34 : vector<32x256xf32>
    %37 = arith.mulf %36, %25 : vector<32x256xf32>
    %38 = arith.addf %37, %25 : vector<32x256xf32>
    %c0_31 = arith.constant 0 : index
    %c0_32 = arith.constant 0 : index
    %c0_33 = arith.constant 0 : index
    %c0_34 = arith.constant 0 : index
    %39 = vector.load %arg7[%c0_31, %c0_32, %c0_33, %c0_34] : memref<1x4x32x256xf32, #tpu.memory_space<vmem>>, vector<1x1x32x256xf32>
    %40 = vector.shape_cast %39 : vector<1x1x32x256xf32> to vector<32x256xf32>
    %41 = vector.shape_cast %38 : vector<32x256xf32> to vector<1x1x32x256xf32>
    tpu.vector_store %arg7[%c0_31, %c0_32, %c0_33, %c0_34], %41 {strides = array<i32>} : memref<1x4x32x256xf32, #tpu.memory_space<vmem>>, vector<1x1x32x256xf32>,
    %c0_35 = arith.constant 0 : index
    %c1_36 = arith.constant 1 : index
    %c0_37 = arith.constant 0 : index
    %c0_38 = arith.constant 0 : index
    %42 = vector.load %arg2[%c0_35, %c1_36, %c0_37, %c0_38] : memref<1x4x32x256xf32, #tpu.memory_space<vmem>>, vector<1x1x32x256xf32>
    %43 = vector.shape_cast %42 : vector<1x1x32x256xf32> to vector<32x256xf32>
    %44 = arith.subf %18, %13 : vector<8x256xf32>
    %cst_39 = arith.constant dense<0.000000e+00> : vector<32x256xf32>
    %45 = tpu.matmul %2, %44, %cst_39 {dimension_numbers = #tpu.dot_dimension_numbers<[1], [0], [0], [1], [0, 0, 1, 1], [], []>} : vector<32x8xf32>, vector<8x256xf32>, vector<32x256xf32> -> vector<32x256xf32>
    %46 = vector.broadcast %3 : vector<32x1xf32> to vector<32x256xf32>
    %47 = arith.addf %45, %46 : vector<32x256xf32>
    %cst_40 = arith.constant 0.000000e+00 : f32
    %48 = vector.broadcast %cst_40 : f32 to vector<32x256xf32>
    %49 = arith.subf %48, %47 : vector<32x256xf32>
    %50 = math.exp %49 : vector<32x256xf32>
    %cst_41 = arith.constant 1.000000e+00 : f32
    %51 = vector.broadcast %cst_41 : f32 to vector<32x256xf32>
    %52 = arith.addf %51, %50 : vector<32x256xf32>
    %cst_42 = arith.constant 1.000000e+00 : f32
    %53 = vector.broadcast %cst_42 : f32 to vector<32x256xf32>
    %54 = arith.divf %53, %52 : vector<32x256xf32>
    %55 = arith.mulf %54, %43 : vector<32x256xf32>
    %56 = arith.addf %55, %43 : vector<32x256xf32>
    %c0_43 = arith.constant 0 : index
    %c1_44 = arith.constant 1 : index
    %c0_45 = arith.constant 0 : index
    %c0_46 = arith.constant 0 : index
    %57 = vector.load %arg7[%c0_43, %c1_44, %c0_45, %c0_46] : memref<1x4x32x256xf32, #tpu.memory_space<vmem>>, vector<1x1x32x256xf32>
    %58 = vector.shape_cast %57 : vector<1x1x32x256xf32> to vector<32x256xf32>
    %59 = vector.shape_cast %56 : vector<32x256xf32> to vector<1x1x32x256xf32>
    tpu.vector_store %arg7[%c0_43, %c1_44, %c0_45, %c0_46], %59 {strides = array<i32>} : memref<1x4x32x256xf32, #tpu.memory_space<vmem>>, vector<1x1x32x256xf32>,
    %c0_47 = arith.constant 0 : index
    %c2_48 = arith.constant 2 : index
    %c0_49 = arith.constant 0 : index
    %c0_50 = arith.constant 0 : index
    %60 = vector.load %arg2[%c0_47, %c2_48, %c0_49, %c0_50] : memref<1x4x32x256xf32, #tpu.memory_space<vmem>>, vector<1x1x32x256xf32>
    %61 = vector.shape_cast %60 : vector<1x1x32x256xf32> to vector<32x256xf32>
    %62 = arith.subf %23, %18 : vector<8x256xf32>
    %cst_51 = arith.constant dense<0.000000e+00> : vector<32x256xf32>
    %63 = tpu.matmul %2, %62, %cst_51 {dimension_numbers = #tpu.dot_dimension_numbers<[1], [0], [0], [1], [0, 0, 1, 1], [], []>} : vector<32x8xf32>, vector<8x256xf32>, vector<32x256xf32> -> vector<32x256xf32>
    %64 = vector.broadcast %3 : vector<32x1xf32> to vector<32x256xf32>
    %65 = arith.addf %63, %64 : vector<32x256xf32>
    %cst_52 = arith.constant 0.000000e+00 : f32
    %66 = vector.broadcast %cst_52 : f32 to vector<32x256xf32>
    %67 = arith.subf %66, %65 : vector<32x256xf32>
    %68 = math.exp %67 : vector<32x256xf32>
    %cst_53 = arith.constant 1.000000e+00 : f32
    %69 = vector.broadcast %cst_53 : f32 to vector<32x256xf32>
    %70 = arith.addf %69, %68 : vector<32x256xf32>
    %cst_54 = arith.constant 1.000000e+00 : f32
    %71 = vector.broadcast %cst_54 : f32 to vector<32x256xf32>
    %72 = arith.divf %71, %70 : vector<32x256xf32>
    %73 = arith.mulf %72, %61 : vector<32x256xf32>
    %74 = arith.addf %73, %61 : vector<32x256xf32>
    %c0_55 = arith.constant 0 : index
    %c2_56 = arith.constant 2 : index
    %c0_57 = arith.constant 0 : index
    %c0_58 = arith.constant 0 : index
    %75 = vector.load %arg7[%c0_55, %c2_56, %c0_57, %c0_58] : memref<1x4x32x256xf32, #tpu.memory_space<vmem>>, vector<1x1x32x256xf32>
    %76 = vector.shape_cast %75 : vector<1x1x32x256xf32> to vector<32x256xf32>
    %77 = vector.shape_cast %74 : vector<32x256xf32> to vector<1x1x32x256xf32>
    tpu.vector_store %arg7[%c0_55, %c2_56, %c0_57, %c0_58], %77 {strides = array<i32>} : memref<1x4x32x256xf32, #tpu.memory_space<vmem>>, vector<1x1x32x256xf32>,
    %c0_59 = arith.constant 0 : index
    %c3_60 = arith.constant 3 : index
    %c0_61 = arith.constant 0 : index
    %c0_62 = arith.constant 0 : index
    %78 = vector.load %arg2[%c0_59, %c3_60, %c0_61, %c0_62] : memref<1x4x32x256xf32, #tpu.memory_space<vmem>>, vector<1x1x32x256xf32>
    %79 = vector.shape_cast %78 : vector<1x1x32x256xf32> to vector<32x256xf32>
    %cst_63 = arith.constant 0.000000e+00 : f32
    %80 = vector.broadcast %cst_63 : f32 to vector<8x256xf32>
    %81 = arith.subf %80, %23 : vector<8x256xf32>
    %cst_64 = arith.constant dense<0.000000e+00> : vector<32x256xf32>
    %82 = tpu.matmul %2, %81, %cst_64 {dimension_numbers = #tpu.dot_dimension_numbers<[1], [0], [0], [1], [0, 0, 1, 1], [], []>} : vector<32x8xf32>, vector<8x256xf32>, vector<32x256xf32> -> vector<32x256xf32>
    %83 = vector.broadcast %3 : vector<32x1xf32> to vector<32x256xf32>
    %84 = arith.addf %82, %83 : vector<32x256xf32>
    %cst_65 = arith.constant 0.000000e+00 : f32
    %85 = vector.broadcast %cst_65 : f32 to vector<32x256xf32>
    %86 = arith.subf %85, %84 : vector<32x256xf32>
    %87 = math.exp %86 : vector<32x256xf32>
    %cst_66 = arith.constant 1.000000e+00 : f32
    %88 = vector.broadcast %cst_66 : f32 to vector<32x256xf32>
    %89 = arith.addf %88, %87 : vector<32x256xf32>
    %cst_67 = arith.constant 1.000000e+00 : f32
    %90 = vector.broadcast %cst_67 : f32 to vector<32x256xf32>
    %91 = arith.divf %90, %89 : vector<32x256xf32>
    %92 = arith.mulf %91, %79 : vector<32x256xf32>
    %93 = arith.addf %92, %79 : vector<32x256xf32>
    %c0_68 = arith.constant 0 : index
    %c3_69 = arith.constant 3 : index
    %c0_70 = arith.constant 0 : index
    %c0_71 = arith.constant 0 : index
    %94 = vector.load %arg7[%c0_68, %c3_69, %c0_70, %c0_71] : memref<1x4x32x256xf32, #tpu.memory_space<vmem>>, vector<1x1x32x256xf32>
    %95 = vector.shape_cast %94 : vector<1x1x32x256xf32> to vector<32x256xf32>
    %96 = vector.shape_cast %93 : vector<32x256xf32> to vector<1x1x32x256xf32>
    tpu.vector_store %arg7[%c0_68, %c3_69, %c0_70, %c0_71], %96 {strides = array<i32>} : memref<1x4x32x256xf32, #tpu.memory_space<vmem>>, vector<1x1x32x256xf32>,
    return
  }
  func.func @transform_0(%arg0: i32, %arg1: i32) -> (i32, i32, i32, i32) {
    %c0_i32 = arith.constant 0 : i32
    %c0_i32_0 = arith.constant 0 : i32
    %c0_i32_1 = arith.constant 0 : i32
    return %arg0, %c0_i32, %c0_i32_0, %arg1 : i32, i32, i32, i32
  }
  func.func @transform_1(%arg0: i32, %arg1: i32) -> (i32, i32) {
    %c0_i32 = arith.constant 0 : i32
    %c0_i32_0 = arith.constant 0 : i32
    %c0_i32_1 = arith.constant 0 : i32
    return %c0_i32, %c0_i32_0 : i32, i32
  }
  func.func @transform_2(%arg0: i32, %arg1: i32) -> (i32, i32) {
    %c0_i32 = arith.constant 0 : i32
    %c0_i32_0 = arith.constant 0 : i32
    %c0_i32_1 = arith.constant 0 : i32
    return %c0_i32, %c0_i32_0 : i32, i32
  }
  func.func @transform_3(%arg0: i32, %arg1: i32) -> (i32, i32) {
    %c0_i32 = arith.constant 0 : i32
    %c0_i32_0 = arith.constant 0 : i32
    %c0_i32_1 = arith.constant 0 : i32
    return %c0_i32, %c0_i32_0 : i32, i32
  }
  func.func @transform_4(%arg0: i32, %arg1: i32) -> (i32, i32) {
    %c0_i32 = arith.constant 0 : i32
    %c0_i32_0 = arith.constant 0 : i32
    %c0_i32_1 = arith.constant 0 : i32
    return %c0_i32, %c0_i32_0 : i32, i32
  }
  func.func @transform_5(%arg0: i32, %arg1: i32) -> (i32, i32, i32, i32) {
    %c0_i32 = arith.constant 0 : i32
    %c0_i32_0 = arith.constant 0 : i32
    %c0_i32_1 = arith.constant 0 : i32
    return %arg0, %c0_i32, %c0_i32_0, %arg1 : i32, i32, i32, i32
  }
}

</mosaic_0001>

<llo_original>
// kernel: tpu_custom_call.1
$region0: #{tpu_custom_call.1}
  #allocation0 [shape = 'u32[]', space=smem, size = 0x4, offset = 0x4, fixed_abs, tag = 'smem constant byte address 0x4 - core index']
  #allocation1 [shape = 'u32[72,128]{1,0:T(1,128)}', space=vmem, size = 0x9000, scoped, tag = 'internal scratch']
  %s0 = inlined_call_operand.hbm [shape: f32[2,4,32,256], index: 0, kind: input, shape index: {}]
  %s1 = inlined_call_operand.vmem [shape: f32[8,32], index: 1, kind: input, shape index: {}]
  %s2 = inlined_call_operand.vmem [shape: f32[8,1], index: 2, kind: input, shape index: {}]
  %s3 = inlined_call_operand.vmem [shape: f32[32,8], index: 3, kind: input, shape index: {}]
  %s4 = inlined_call_operand.vmem [shape: f32[32,1], index: 4, kind: input, shape index: {}]
  %s5 = inlined_call_operand.hbm [shape: f32[2,4,32,256], index: 5, kind: output, shape index: {}]
  %s6 = sld [smem:[#allocation0]]
  $region57: #{tpu_custom_call.1} parent=0
    _
  %s8 = ssub.s32 1, %s6
  %s9 = scalar_select 0, %s8, %s6
  $region1: #{tpu_custom_call.1} parent=0
    #allocation2 [shape = 'u8[262144]{0}', space=vmem, size = 0x40000, scoped, tag = 'input window, operand 0']
    #allocation3 [shape = 's32[2]{0}', space=sflag, size = 0x8, scoped, tag = 'scoped memory for tpu_custom_call.1']
    #allocation4 [shape = 's32[2]{0}', space=sflag, size = 0x8, scoped, tag = 'scoped memory for tpu_custom_call.1']
    #allocation5 [shape = 'u8[262144]{0}', space=vmem, size = 0x40000, scoped, tag = 'output window, operand 0']
    %10 = vsyncpa [#allocation3], 0
    %s11 = scalar_lea.sflag [#allocation3], 1
    %12 = vsyncpa %s11, 0
    %13 = vsyncpa [#allocation4], 0
    %s14 = scalar_lea.sflag [#allocation4], 1
    %15 = vsyncpa %s14, 0
    loop: start=0, step=1, limit=4
    $region2: #{tpu_custom_call.1} parent=1 // loop_pre_header
      _
    $region3: #{tpu_custom_call.1} parent=1 // loop_header
      %s17 = sphi 0, %s21
      %p18 = scmp.ge.s32.totalorder %s17, 4
      %s24 = sphi 0, %s36
      %s25 = sphi 0, %s32
      %s26 = sphi 0, %s24
      %s27 = sphi 0, %s25
      %s28 = sphi 0, %s26
      %s29 = sphi 0, %s27
      %s41 = sphi 0, %s43
      %s44 = sphi 0, %s41
      %s45 = sphi 0, %s44
      %s61 = sphi 0, %s45
      %s65 = sphi 0, %s65
      %s67 = sphi 0, %s65
      %s68 = sphi 0, %s67
      %s82 = sphi 0, %s68
      %s86 = sphi 0, %s86
      %s88 = sphi 0, %s86
      %s89 = sphi 0, %s88
      %s103 = sphi 0, %s89
      %s107 = sphi 0, %s107
      %s109 = sphi 0, %s107
      %s110 = sphi 0, %s109
      %s124 = sphi 0, %s110
      %s128 = sphi 0, %s128
      %s130 = sphi 0, %s128
      %s131 = sphi 0, %s130
      %s145 = sphi 0, %s131
      %s153 = sphi 0, %s155
      %s156 = sphi 0, %s153
      %s157 = sphi 0, %s156
      %s173 = sphi 0, %s157
    $region4: #{tpu_custom_call.1} parent=1 // loop_header_branch
      %20 = sbr.rel (%p18) target = $region8
    $region5: #{tpu_custom_call.1} parent=1 // loop_body
      %s22 = ssub.s32 %s17, 1
      %s23 = ssub.s32 %s17, 2
      %s30 = sadd.s32 1, %s25
      %p31 = scmp.ge.s32.totalorder %s30, 1
      %s32 = scalar_select %p31, 0, %s30
      %s33 = sadd.s32 1, %s24
      %s34 = scalar_select %p31, %s33, %s24
      %p35 = scmp.ge.s32.totalorder %s34, 2
      %s36 = scalar_select %p35, 0, %s34
      %s37 = ssub.s32 %s24, %s36
      %s38 = ssub.s32 %s25, %s32
      %s39 = sor.u32 %s37, %s38
      %p40 = scmp.eq.s32.totalorder %s39, 0
      %s42 = sadd.s32 %s41, 1
      %s43 = scalar_select %p40, %s41, %s42
      %p46 = pneg %p40
      %p47 = scmp.eq.s32.totalorder %s17, 1
      %p48 = por %p46, %p47
      %p49 = scmp.ne.s32.totalorder %s41, %s44
      %p50 = scmp.eq.s32.totalorder %s17, 0
      %p51 = por %p49, %p50
      %p52 = scmp.ne.s32.totalorder %s41, %s44
      %p53 = scmp.eq.s32.totalorder %s22, 1
      %p54 = por %p52, %p53
      %p55 = scmp.ne.s32.totalorder %s44, %s45
      %p56 = scmp.eq.s32.totalorder %s22, 0
      %p57 = por %p55, %p56
      %p58 = scmp.ne.s32.totalorder %s44, %s45
      %p59 = scmp.eq.s32.totalorder %s23, 1
      %p60 = por %p58, %p59
      %p62 = scmp.ne.s32.totalorder %s45, %s61
      %p63 = scmp.eq.s32.totalorder %s23, 0
      %p64 = por %p62, %p63
      %s66 = sadd.s32 %s65, 1
      %p69 = scmp.eq.s32.totalorder %s17, 1
      %p70 = scmp.ne.s32.totalorder %s65, %s67
      %p71 = scmp.eq.s32.totalorder %s17, 0
      %p72 = por %p70, %p71
      %p73 = scmp.ne.s32.totalorder %s65, %s67
      %p74 = scmp.eq.s32.totalorder %s22, 1
      %p75 = por %p73, %p74
      %p76 = scmp.ne.s32.totalorder %s67, %s68
      %p77 = scmp.eq.s32.totalorder %s22, 0
      %p78 = por %p76, %p77
      %p79 = scmp.ne.s32.totalorder %s67, %s68
      %p80 = scmp.eq.s32.totalorder %s23, 1
      %p81 = por %p79, %p80
      %p83 = scmp.ne.s32.totalorder %s68, %s82
      %p84 = scmp.eq.s32.totalorder %s23, 0
      %p85 = por %p83, %p84
      %s87 = sadd.s32 %s86, 1
      %p90 = scmp.eq.s32.totalorder %s17, 1
      %p91 = scmp.ne.s32.totalorder %s86, %s88
      %p92 = scmp.eq.s32.totalorder %s17, 0
      %p93 = por %p91, %p92
      %p94 = scmp.ne.s32.totalorder %s86, %s88
      %p95 = scmp.eq.s32.totalorder %s22, 1
      %p96 = por %p94, %p95
      %p97 = scmp.ne.s32.totalorder %s88, %s89
      %p98 = scmp.eq.s32.totalorder %s22, 0
      %p99 = por %p97, %p98
      %p100 = scmp.ne.s32.totalorder %s88, %s89
      %p101 = scmp.eq.s32.totalorder %s23, 1
      %p102 = por %p100, %p101
      %p104 = scmp.ne.s32.totalorder %s89, %s103
      %p105 = scmp.eq.s32.totalorder %s23, 0
      %p106 = por %p104, %p105
      %s108 = sadd.s32 %s107, 1
      %p111 = scmp.eq.s32.totalorder %s17, 1
      %p112 = scmp.ne.s32.totalorder %s107, %s109
      %p113 = scmp.eq.s32.totalorder %s17, 0
      %p114 = por %p112, %p113
      %p115 = scmp.ne.s32.totalorder %s107, %s109
      %p116 = scmp.eq.s32.totalorder %s22, 1
      %p117 = por %p115, %p116
      %p118 = scmp.ne.s32.totalorder %s109, %s110
      %p119 = scmp.eq.s32.totalorder %s22, 0
      %p120 = por %p118, %p119
      %p121 = scmp.ne.s32.totalorder %s109, %s110
      %p122 = scmp.eq.s32.totalorder %s23, 1
      %p123 = por %p121, %p122
      %p125 = scmp.ne.s32.totalorder %s110, %s124
      %p126 = scmp.eq.s32.totalorder %s23, 0
      %p127 = por %p125, %p126
      %s129 = sadd.s32 %s128, 1
      %p132 = scmp.eq.s32.totalorder %s17, 1
      %p133 = scmp.ne.s32.totalorder %s128, %s130
      %p134 = scmp.eq.s32.totalorder %s17, 0
      %p135 = por %p133, %p134
      %p136 = scmp.ne.s32.totalorder %s128, %s130
      %p137 = scmp.eq.s32.totalorder %s22, 1
      %p138 = por %p136, %p137
      %p139 = scmp.ne.s32.totalorder %s130, %s131
      %p140 = scmp.eq.s32.totalorder %s22, 0
      %p141 = por %p139, %p140
      %p142 = scmp.ne.s32.totalorder %s130, %s131
      %p143 = scmp.eq.s32.totalorder %s23, 1
      %p144 = por %p142, %p143
      %p146 = scmp.ne.s32.totalorder %s131, %s145
      %p147 = scmp.eq.s32.totalorder %s23, 0
      %p148 = por %p146, %p147
      %s149 = ssub.s32 %s24, %s36
      %s150 = ssub.s32 %s25, %s32
      %s151 = sor.u32 %s149, %s150
      %p152 = scmp.eq.s32.totalorder %s151, 0
      %s154 = sadd.s32 %s153, 1
      %s155 = scalar_select %p152, %s153, %s154
      %p158 = pneg %p152
      %p159 = scmp.eq.s32.totalorder %s17, 1
      %p160 = por %p158, %p159
      %p161 = scmp.ne.s32.totalorder %s153, %s156
      %p162 = scmp.eq.s32.totalorder %s17, 0
      %p163 = por %p161, %p162
      %p164 = scmp.ne.s32.totalorder %s153, %s156
      %p165 = scmp.eq.s32.totalorder %s22, 1
      %p166 = por %p164, %p165
      %p167 = scmp.ne.s32.totalorder %s156, %s157
      %p168 = scmp.eq.s32.totalorder %s22, 0
      %p169 = por %p167, %p168
      %p170 = scmp.ne.s32.totalorder %s156, %s157
      %p171 = scmp.eq.s32.totalorder %s23, 1
      %p172 = por %p170, %p171
      %p174 = scmp.ne.s32.totalorder %s157, %s173
      %p175 = scmp.eq.s32.totalorder %s23, 0
      %p176 = por %p174, %p175
      %p177 = scmp.le.s32.totalorder 1, %s17
      %p178 = scmp.lt.s32.totalorder %s17, 3
      %p179 = pnand %p177, %p178
      %p180 = pneg %p179
      // Predicated region
      $region9: #{tpu_custom_call.1} parent=5 // pred_check
        _
      $region10: #{tpu_custom_call.1} parent=5 // pred_check_branch
        %182 = sbr.rel (%p179) target = $region12
      $region11: #{tpu_custom_call.1} parent=5 // pred_region
        %s183 = ssub.s32 %s17, 1
        // Predicated region
        $region13: #{tpu_custom_call.1} parent=11 // pred_check
          %p184 = pneg %p78
        $region14: #{tpu_custom_call.1} parent=11 // pred_check_branch
          %186 = sbr.rel (%p184) target = $region16
        $region15: #{tpu_custom_call.1} parent=11 // pred_region
          _
        $region16: #{tpu_custom_call.1} parent=11 // pred_fallthru
          _
        // Predicated region
        $region17: #{tpu_custom_call.1} parent=11 // pred_check
          %p187 = pneg %p99
        $region18: #{tpu_custom_call.1} parent=11 // pred_check_branch
          %189 = sbr.rel (%p187) target = $region20
        $region19: #{tpu_custom_call.1} parent=11 // pred_region
          _
        $region20: #{tpu_custom_call.1} parent=11 // pred_fallthru
          _
        // Predicated region
        $region21: #{tpu_custom_call.1} parent=11 // pred_check
          %p190 = pneg %p120
        $region22: #{tpu_custom_call.1} parent=11 // pred_check_branch
          %192 = sbr.rel (%p190) target = $region24
        $region23: #{tpu_custom_call.1} parent=11 // pred_region
          _
        $region24: #{tpu_custom_call.1} parent=11 // pred_fallthru
          _
        // Predicated region
        $region25: #{tpu_custom_call.1} parent=11 // pred_check
          %p193 = pneg %p141
        $region26: #{tpu_custom_call.1} parent=11 // pred_check_branch
          %195 = sbr.rel (%p193) target = $region28
        $region27: #{tpu_custom_call.1} parent=11 // pred_region
          _
        $region28: #{tpu_custom_call.1} parent=11 // pred_fallthru
          _
      $region12: #{tpu_custom_call.1} parent=5 // pred_fallthru
        _
      %p196 = scmp.lt.s32.totalorder %s17, 2
      // Predicated region
      $region29: #{tpu_custom_call.1} parent=5 // pred_check
        %p197 = pneg %p196
      $region30: #{tpu_custom_call.1} parent=5 // pred_check_branch
        %199 = sbr.rel (%p197) target = $region32
      $region31: #{tpu_custom_call.1} parent=5 // pred_region
        // Predicated region
        $region33: #{tpu_custom_call.1} parent=31 // pred_check
          %p200 = pneg %p51
        $region34: #{tpu_custom_call.1} parent=31 // pred_check_branch
          %202 = sbr.rel (%p200) target = $region36
        $region35: #{tpu_custom_call.1} parent=31 // pred_region
          %s203 = sand.u32 %s41, 1
          %s204 = scalar_lea.sflag [#allocation3], %s203
          %s205 = sand.u32 %s41, 1
          %s206 = smul.addr %s205, 256
          %s207 = scalar_lea.vmem [#allocation2], %s206
          %s208 = smul.u32 2, %s25
          %210 = vsyncadd %s204, 0
          %s211 = smul.addr %s24, 32
          %s212 = sadd.s32 %s208, %s211
          %s213 = smul.addr %s212, 8
          %s214 = scalar_lea.hbm %s0, %s213
          %s215 = sshll.u32 %s214, 4
          %s216 = int_to_ptr.hbm [resolvable:$true] %s215
          %s217 = sshll.u32 %s207, 4
          %s218 = int_to_ptr.vmem [resolvable:$true] %s217
          %223 = dma.hbm_to_vmem [thread:$0]  %s216, 4096, %s218, %s204, 256, 256, 16
        $region36: #{tpu_custom_call.1} parent=31 // pred_fallthru
          _
      $region32: #{tpu_custom_call.1} parent=5 // pred_fallthru
        _
      %p224 = scmp.le.s32.totalorder 1, %s17
      %p225 = scmp.lt.s32.totalorder %s17, 3
      %p226 = pnand %p224, %p225
      %p227 = pneg %p226
      // Predicated region
      $region37: #{tpu_custom_call.1} parent=5 // pred_check
        _
      $region38: #{tpu_custom_call.1} parent=5 // pred_check_branch
        %229 = sbr.rel (%p226) target = $region40
      $region39: #{tpu_custom_call.1} parent=5 // pred_region
        %s230 = ssub.s32 %s17, 1
        %s231 = sand.u32 %s44, 1
        %s232 = scalar_lea.sflag [#allocation3], %s231
        %s233 = sand.u32 %s44, 1
        %s234 = smul.addr %s233, 256
        %s235 = scalar_lea.vmem [#allocation2], %s234
        // Predicated region
        $region41: #{tpu_custom_call.1} parent=39 // pred_check
          %p236 = pneg %p57
        $region42: #{tpu_custom_call.1} parent=39 // pred_check_branch
          %238 = sbr.rel (%p236) target = $region44
        $region43: #{tpu_custom_call.1} parent=39 // pred_region
          %240 = dma.done %s232, 4096
        $region44: #{tpu_custom_call.1} parent=39 // pred_fallthru
          _
        %s241 = sand.u32 %s44, 1
        %s242 = scalar_lea.sflag [#allocation3], %s241
        %s243 = sand.u32 %s44, 1
        %s244 = smul.addr %s243, 256
        %s245 = scalar_lea.vmem [#allocation2], %s244
        %p246 = pneg %p57
        %p247 = pneg %p54
        %p248 = pneg %p78
        %p249 = pneg %p75
        %p250 = pneg %p99
        %p251 = pneg %p96
        %p252 = pneg %p120
        %p253 = pneg %p117
        %p254 = pneg %p141
        %p255 = pneg %p138
        %p256 = pneg %p169
        %p257 = pneg %p166
        %s258 = sand.u32 %s156, 1
        %s259 = scalar_lea.sflag [#allocation4], %s258
        %s260 = sand.u32 %s156, 1
        %s261 = smul.addr %s260, 256
        %s262 = scalar_lea.vmem [#allocation5], %s261
        %s263 = smul.u32 2, %s27
        %s264 = smul.u32 2, %s27
        %v265 = vld [vmem:[%s1] sm:$0xff]
        %v266 = vld [vmem:[%s2] sm:$0xff]
        %v267 = vld [vmem:[%s3] sm:$0xff]
        %v268 = vld [vmem:[%s3 + $0x8] sm:$0xff]
        %v269 = vld [vmem:[%s3 + $0x10] sm:$0xff]
        %v270 = vld [vmem:[%s3 + $0x18] sm:$0xff]
        %v271 = vld [vmem:[%s4] sm:$0xff]
        %v272 = vld [vmem:[%s4 + $0x8] sm:$0xff]
        %v273 = vld [vmem:[%s4 + $0x10] sm:$0xff]
        %v274 = vld [vmem:[%s4 + $0x18] sm:$0xff]
        %v275 = vld [vmem:[%s235] sm:$0xff]
        %v276 = vld [vmem:[%s235 + $0x8] sm:$0xff]
        %v277 = vld [vmem:[%s235 + $0x10] sm:$0xff]
        %v278 = vld [vmem:[%s235 + $0x18] sm:$0xff]
        %v279 = vld [vmem:[%s235 + $0x20] sm:$0xff]
        %v280 = vld [vmem:[%s235 + $0x28] sm:$0xff]
        %v281 = vld [vmem:[%s235 + $0x30] sm:$0xff]
        %v282 = vld [vmem:[%s235 + $0x38] sm:$0xff]
        %284 = vset.pattern.permute.xlu0 0
        %285 = vperm.xlu0 %284, %v266
        %v286 = vpop.permute.xlu0 %285
        %vm288 = vcmask 261120
        %v290 = vsel %vm288, %v265, 0
        %292 = vmatpush.msra.mxu0 0.0
        %293 = vmatpush.msra.mxu0 0.0
        %294 = vmatpush.msra.mxu0 0.0
        %295 = vmatpush.msra.mxu0 0.0
        %296 = vmatpush.msra.mxu0 0.0
        %297 = vmatpush.msra.mxu0 0.0
        %298 = vmatpush.msra.mxu0 0.0
        %299 = vmatpush.msra.mxu0 0.0
        %300 = vmatpush.msra.mxu0 0.0
        %301 = vmatpush.msra.mxu0 0.0
        %302 = vmatpush.msra.mxu0 0.0
        %303 = vmatpush.msra.mxu0 0.0
        %304 = vmatpush.msra.mxu0 %v281
        %305 = vmatpush.msra.mxu0 %v279
        %306 = vmatpush.msra.mxu0 %v277
        %307 = vmatpush.msra.mxu0 %v275
        %308 = vmatmul.f32.gmra.mxu0 %v290
        %v309 = vpop.f32.mrf.mxu0
        %v310 = vadd.f32 %v286, %v309
        %311 = vdwg.mxu0
        %312 = vmatpush.msra.mxu0 0.0
        %313 = vmatpush.msra.mxu0 0.0
        %314 = vmatpush.msra.mxu0 0.0
        %315 = vmatpush.msra.mxu0 0.0
        %316 = vmatpush.msra.mxu0 0.0
        %317 = vmatpush.msra.mxu0 0.0
        %318 = vmatpush.msra.mxu0 0.0
        %319 = vmatpush.msra.mxu0 0.0
        %320 = vmatpush.msra.mxu0 0.0
        %321 = vmatpush.msra.mxu0 0.0
        %322 = vmatpush.msra.mxu0 0.0
        %323 = vmatpush.msra.mxu0 0.0
        %324 = vmatpush.msra.mxu0 %v282
        %325 = vmatpush.msra.mxu0 %v280
        %326 = vmatpush.msra.mxu0 %v278
        %327 = vmatpush.msra.mxu0 %v276
        %328 = vmatmul.f32.gmra.mxu0 %v290
        %v329 = vpop.f32.mrf.mxu0
        %v330 = vadd.f32 %v286, %v329
        %331 = vdwg.mxu0
        %s332 = scalar_lea.vmem %s235, 64 [#allocation2]
        %v333 = vld [vmem:[%s332] sm:$0xff]
        %v334 = vld [vmem:[%s332 + $0x8] sm:$0xff]
        %v335 = vld [vmem:[%s332 + $0x10] sm:$0xff]
        %v336 = vld [vmem:[%s332 + $0x18] sm:$0xff]
        %v337 = vld [vmem:[%s332 + $0x20] sm:$0xff]
        %v338 = vld [vmem:[%s332 + $0x28] sm:$0xff]
        %v339 = vld [vmem:[%s332 + $0x30] sm:$0xff]
        %v340 = vld [vmem:[%s332 + $0x38] sm:$0xff]
        %341 = vmatpush.msra.mxu0 0.0
        %342 = vmatpush.msra.mxu0 0.0
        %343 = vmatpush.msra.mxu0 0.0
        %344 = vmatpush.msra.mxu0 0.0
        %345 = vmatpush.msra.mxu0 0.0
        %346 = vmatpush.msra.mxu0 0.0
        %347 = vmatpush.msra.mxu0 0.0
        %348 = vmatpush.msra.mxu0 0.0
        %349 = vmatpush.msra.mxu0 0.0
        %350 = vmatpush.msra.mxu0 0.0
        %351 = vmatpush.msra.mxu0 0.0
        %352 = vmatpush.msra.mxu0 0.0
        %353 = vmatpush.msra.mxu0 %v339
        %354 = vmatpush.msra.mxu0 %v337
        %355 = vmatpush.msra.mxu0 %v335
        %356 = vmatpush.msra.mxu0 %v333
        %357 = vmatmul.f32.gmra.mxu0 %v290
        %v358 = vpop.f32.mrf.mxu0
        %v359 = vadd.f32 %v286, %v358
        %360 = vdwg.mxu0
        %361 = vmatpush.msra.mxu0 0.0
        %362 = vmatpush.msra.mxu0 0.0
        %363 = vmatpush.msra.mxu0 0.0
        %364 = vmatpush.msra.mxu0 0.0
        %365 = vmatpush.msra.mxu0 0.0
        %366 = vmatpush.msra.mxu0 0.0
        %367 = vmatpush.msra.mxu0 0.0
        %368 = vmatpush.msra.mxu0 0.0
        %369 = vmatpush.msra.mxu0 0.0
        %370 = vmatpush.msra.mxu0 0.0
        %371 = vmatpush.msra.mxu0 0.0
        %372 = vmatpush.msra.mxu0 0.0
        %373 = vmatpush.msra.mxu0 %v340
        %374 = vmatpush.msra.mxu0 %v338
        %375 = vmatpush.msra.mxu0 %v336
        %376 = vmatpush.msra.mxu0 %v334
        %377 = vmatmul.f32.gmra.mxu0 %v290
        %v378 = vpop.f32.mrf.mxu0
        %v379 = vadd.f32 %v286, %v378
        %380 = vdwg.mxu0
        %s381 = scalar_lea.vmem %s235, 128 [#allocation2]
        %v382 = vld [vmem:[%s381] sm:$0xff]
        %v383 = vld [vmem:[%s381 + $0x8] sm:$0xff]
        %v384 = vld [vmem:[%s381 + $0x10] sm:$0xff]
        %v385 = vld [vmem:[%s381 + $0x18] sm:$0xff]
        %v386 = vld [vmem:[%s381 + $0x20] sm:$0xff]
        %v387 = vld [vmem:[%s381 + $0x28] sm:$0xff]
        %v388 = vld [vmem:[%s381 + $0x30] sm:$0xff]
        %v389 = vld [vmem:[%s381 + $0x38] sm:$0xff]
        %390 = vmatpush.msra.mxu0 0.0
        %391 = vmatpush.msra.mxu0 0.0
        %392 = vmatpush.msra.mxu0 0.0
        %393 = vmatpush.msra.mxu0 0.0
        %394 = vmatpush.msra.mxu0 0.0
        %395 = vmatpush.msra.mxu0 0.0
        %396 = vmatpush.msra.mxu0 0.0
        %397 = vmatpush.msra.mxu0 0.0
        %398 = vmatpush.msra.mxu0 0.0
        %399 = vmatpush.msra.mxu0 0.0
        %400 = vmatpush.msra.mxu0 0.0
        %401 = vmatpush.msra.mxu0 0.0
        %402 = vmatpush.msra.mxu0 %v388
        %403 = vmatpush.msra.mxu0 %v386
        %404 = vmatpush.msra.mxu0 %v384
        %405 = vmatpush.msra.mxu0 %v382
        %406 = vmatmul.f32.gmra.mxu0 %v290
        %v407 = vpop.f32.mrf.mxu0
        %v408 = vadd.f32 %v286, %v407
        %409 = vdwg.mxu0
        %410 = vmatpush.msra.mxu0 0.0
        %411 = vmatpush.msra.mxu0 0.0
        %412 = vmatpush.msra.mxu0 0.0
        %413 = vmatpush.msra.mxu0 0.0
        %414 = vmatpush.msra.mxu0 0.0
        %415 = vmatpush.msra.mxu0 0.0
        %416 = vmatpush.msra.mxu0 0.0
        %417 = vmatpush.msra.mxu0 0.0
        %418 = vmatpush.msra.mxu0 0.0
        %419 = vmatpush.msra.mxu0 0.0
        %420 = vmatpush.msra.mxu0 0.0
        %421 = vmatpush.msra.mxu0 0.0
        %422 = vmatpush.msra.mxu0 %v389
        %423 = vmatpush.msra.mxu0 %v387
        %424 = vmatpush.msra.mxu0 %v385
        %425 = vmatpush.msra.mxu0 %v383
        %426 = vmatmul.f32.gmra.mxu0 %v290
        %v427 = vpop.f32.mrf.mxu0
        %v428 = vadd.f32 %v286, %v427
        %429 = vdwg.mxu0
        %s430 = scalar_lea.vmem %s235, 192 [#allocation2]
        %v431 = vld [vmem:[%s430] sm:$0xff]
        %v432 = vld [vmem:[%s430 + $0x8] sm:$0xff]
        %v433 = vld [vmem:[%s430 + $0x10] sm:$0xff]
        %v434 = vld [vmem:[%s430 + $0x18] sm:$0xff]
        %v435 = vld [vmem:[%s430 + $0x20] sm:$0xff]
        %v436 = vld [vmem:[%s430 + $0x28] sm:$0xff]
        %v437 = vld [vmem:[%s430 + $0x30] sm:$0xff]
        %v438 = vld [vmem:[%s430 + $0x38] sm:$0xff]
        %439 = vmatpush.msra.mxu0 0.0
        %440 = vmatpush.msra.mxu0 0.0
        %441 = vmatpush.msra.mxu0 0.0
        %442 = vmatpush.msra.mxu0 0.0
        %443 = vmatpush.msra.mxu0 0.0
        %444 = vmatpush.msra.mxu0 0.0
        %445 = vmatpush.msra.mxu0 0.0
        %446 = vmatpush.msra.mxu0 0.0
        %447 = vmatpush.msra.mxu0 0.0
        %448 = vmatpush.msra.mxu0 0.0
        %449 = vmatpush.msra.mxu0 0.0
        %450 = vmatpush.msra.mxu0 0.0
        %451 = vmatpush.msra.mxu0 %v437
        %452 = vmatpush.msra.mxu0 %v435
        %453 = vmatpush.msra.mxu0 %v433
        %454 = vmatpush.msra.mxu0 %v431
        %455 = vmatmul.f32.gmra.mxu0 %v290
        %v456 = vpop.f32.mrf.mxu0
        %v457 = vadd.f32 %v286, %v456
        %458 = vdwg.mxu0
        %459 = vmatpush.msra.mxu0 0.0
        %460 = vmatpush.msra.mxu0 0.0
        %461 = vmatpush.msra.mxu0 0.0
        %462 = vmatpush.msra.mxu0 0.0
        %463 = vmatpush.msra.mxu0 0.0
        %464 = vmatpush.msra.mxu0 0.0
        %465 = vmatpush.msra.mxu0 0.0
        %466 = vmatpush.msra.mxu0 0.0
        %467 = vmatpush.msra.mxu0 0.0
        %468 = vmatpush.msra.mxu0 0.0
        %469 = vmatpush.msra.mxu0 0.0
        %470 = vmatpush.msra.mxu0 0.0
        %471 = vmatpush.msra.mxu0 %v438
        %472 = vmatpush.msra.mxu0 %v436
        %473 = vmatpush.msra.mxu0 %v434
        %474 = vmatpush.msra.mxu0 %v432
        %475 = vmatmul.f32.gmra.mxu0 %v290
        %v476 = vpop.f32.mrf.mxu0
        %v477 = vadd.f32 %v286, %v476
        %478 = vdwg.mxu0
        %v479 = vsub.f32 %v359, %v310
        %v480 = vsub.f32 %v379, %v330
        %482 = vset.pattern.permute.xlu0 0
        %483 = vperm.xlu0 %482, %v271
        %v484 = vpop.permute.xlu0 %483
        %487 = vset.pattern.permute.xlu0 0
        %488 = vperm.xlu0 %487, %v272
        %v489 = vpop.permute.xlu0 %488
        %492 = vset.pattern.permute.xlu0 0
        %493 = vperm.xlu0 %492, %v273
        %v494 = vpop.permute.xlu0 %493
        %497 = vset.pattern.permute.xlu0 0
        %498 = vperm.xlu0 %497, %v274
        %v499 = vpop.permute.xlu0 %498
        %vm501 = vcmask 64512
        %v503 = vsel %vm501, %v267, 0
        %v506 = vsel %vm501, %v268, 0
        %v509 = vsel %vm501, %v269, 0
        %v512 = vsel %vm501, %v270, 0
        %514 = vmatpush.msra.mxu0 0.0
        %515 = vmatpush.msra.mxu0 0.0
        %516 = vmatpush.msra.mxu0 0.0
        %517 = vmatpush.msra.mxu0 0.0
        %518 = vmatpush.msra.mxu0 0.0
        %519 = vmatpush.msra.mxu0 0.0
        %520 = vmatpush.msra.mxu0 0.0
        %521 = vmatpush.msra.mxu0 0.0
        %522 = vmatpush.msra.mxu0 0.0
        %523 = vmatpush.msra.mxu0 0.0
        %524 = vmatpush.msra.mxu0 0.0
        %525 = vmatpush.msra.mxu0 0.0
        %526 = vmatpush.msra.mxu0 0.0
        %527 = vmatpush.msra.mxu0 0.0
        %528 = vmatpush.msra.mxu0 0.0
        %529 = vmatpush.msra.mxu0 %v479
        %530 = vmatmul.f32.gmra.mxu0 %v503
        %v531 = vpop.f32.mrf.mxu0
        %v532 = vadd.f32 %v484, %v531
        %533 = vmatmul.f32.gmra.mxu0 %v506
        %v534 = vpop.f32.mrf.mxu0
        %v535 = vadd.f32 %v489, %v534
        %536 = vmatmul.f32.gmra.mxu0 %v509
        %v537 = vpop.f32.mrf.mxu0
        %v538 = vadd.f32 %v494, %v537
        %539 = vmatmul.f32.gmra.mxu0 %v512
        %v540 = vpop.f32.mrf.mxu0
        %v541 = vadd.f32 %v499, %v540
        %542 = vdwg.mxu0
        %543 = vmatpush.msra.mxu0 0.0
        %544 = vmatpush.msra.mxu0 0.0
        %545 = vmatpush.msra.mxu0 0.0
        %546 = vmatpush.msra.mxu0 0.0
        %547 = vmatpush.msra.mxu0 0.0
        %548 = vmatpush.msra.mxu0 0.0
        %549 = vmatpush.msra.mxu0 0.0
        %550 = vmatpush.msra.mxu0 0.0
        %551 = vmatpush.msra.mxu0 0.0
        %552 = vmatpush.msra.mxu0 0.0
        %553 = vmatpush.msra.mxu0 0.0
        %554 = vmatpush.msra.mxu0 0.0
        %555 = vmatpush.msra.mxu0 0.0
        %556 = vmatpush.msra.mxu0 0.0
        %557 = vmatpush.msra.mxu0 0.0
        %558 = vmatpush.msra.mxu0 %v480
        %559 = vmatmul.f32.gmra.mxu0 %v503
        %v560 = vpop.f32.mrf.mxu0
        %v561 = vadd.f32 %v484, %v560
        %562 = vmatmul.f32.gmra.mxu0 %v506
        %v563 = vpop.f32.mrf.mxu0
        %v564 = vadd.f32 %v489, %v563
        %565 = vmatmul.f32.gmra.mxu0 %v509
        %v566 = vpop.f32.mrf.mxu0
        %v567 = vadd.f32 %v494, %v566
        %568 = vmatmul.f32.gmra.mxu0 %v512
        %v569 = vpop.f32.mrf.mxu0
        %v570 = vadd.f32 %v499, %v569
        %571 = vdwg.mxu0
        %v572 = vsub.f32 0.0, %v532
        %v573 = vsub.f32 0.0, %v561
        %v574 = vsub.f32 0.0, %v535
        %v575 = vsub.f32 0.0, %v564
        %v576 = vsub.f32 0.0, %v538
        %v577 = vsub.f32 0.0, %v567
        %v578 = vsub.f32 0.0, %v541
        %v579 = vsub.f32 0.0, %v570
        %v580 = vmul.f32 %v572, 1.442695
        %v581 = vpow.pop %v580
        %v582 = vmul.f32 %v573, 1.442695
        %v583 = vpow.pop %v582
        %v584 = vmul.f32 %v574, 1.442695
        %v585 = vpow.pop %v584
        %v586 = vmul.f32 %v575, 1.442695
        %v587 = vpow.pop %v586
        %v588 = vmul.f32 %v576, 1.442695
        %v589 = vpow.pop %v588
        %v590 = vmul.f32 %v577, 1.442695
        %v591 = vpow.pop %v590
        %v592 = vmul.f32 %v578, 1.442695
        %v593 = vpow.pop %v592
        %v594 = vmul.f32 %v579, 1.442695
        %v595 = vpow.pop %v594
        %v596 = vadd.f32 %v581, 1.0
        %v597 = vadd.f32 %v583, 1.0
        %v598 = vadd.f32 %v585, 1.0
        %v599 = vadd.f32 %v587, 1.0
        %v600 = vadd.f32 %v589, 1.0
        %v601 = vadd.f32 %v591, 1.0
        %v602 = vadd.f32 %v593, 1.0
        %v603 = vadd.f32 %v595, 1.0
        %v604 = vrcp.pop %v596
        %v605 = vmul.f32 %v596, %v604
        %v606 = vsub.f32 1.0, %v605
        %v607 = vmul.f32 %v604, %v606
        %v608 = vadd.f32 %v604, %v607
        %vm609 = vweird.f32 %v596
        %vm610 = vweird.f32 %v604
        %vm611 = vmor %vm609, %vm610
        %v612 = vsel %vm611, %v604, %v608
        %v613 = vand.u32 2147483647, %v596
        %vm614 = vcmp.eq.f32.partialorder %v613, 8.507059e+37
        %v615 = vand.u32 %v596, 2147483648
        %v616 = vor.u32 1.1754944e-38, %v615
        %v617 = vsel %vm614, %v616, %v612
        %v618 = vmul.f32 1.0, %v617
        %v619 = vrcp.pop %v597
        %v620 = vmul.f32 %v597, %v619
        %v621 = vsub.f32 1.0, %v620
        %v622 = vmul.f32 %v619, %v621
        %v623 = vadd.f32 %v619, %v622
        %vm624 = vweird.f32 %v597
        %vm625 = vweird.f32 %v619
        %vm626 = vmor %vm624, %vm625
        %v627 = vsel %vm626, %v619, %v623
        %v628 = vand.u32 2147483647, %v597
        %vm629 = vcmp.eq.f32.partialorder %v628, 8.507059e+37
        %v630 = vand.u32 %v597, 2147483648
        %v631 = vor.u32 1.1754944e-38, %v630
        %v632 = vsel %vm629, %v631, %v627
        %v633 = vmul.f32 1.0, %v632
        %v634 = vrcp.pop %v598
        %v635 = vmul.f32 %v598, %v634
        %v636 = vsub.f32 1.0, %v635
        %v637 = vmul.f32 %v634, %v636
        %v638 = vadd.f32 %v634, %v637
        %vm639 = vweird.f32 %v598
        %vm640 = vweird.f32 %v634
        %vm641 = vmor %vm639, %vm640
        %v642 = vsel %vm641, %v634, %v638
        %v643 = vand.u32 2147483647, %v598
        %vm644 = vcmp.eq.f32.partialorder %v643, 8.507059e+37
        %v645 = vand.u32 %v598, 2147483648
        %v646 = vor.u32 1.1754944e-38, %v645
        %v647 = vsel %vm644, %v646, %v642
        %v648 = vmul.f32 1.0, %v647
        %v649 = vrcp.pop %v599
        %v650 = vmul.f32 %v599, %v649
        %v651 = vsub.f32 1.0, %v650
        %v652 = vmul.f32 %v649, %v651
        %v653 = vadd.f32 %v649, %v652
        %vm654 = vweird.f32 %v599
        %vm655 = vweird.f32 %v649
        %vm656 = vmor %vm654, %vm655
        %v657 = vsel %vm656, %v649, %v653
        %v658 = vand.u32 2147483647, %v599
        %vm659 = vcmp.eq.f32.partialorder %v658, 8.507059e+37
        %v660 = vand.u32 %v599, 2147483648
        %v661 = vor.u32 1.1754944e-38, %v660
        %v662 = vsel %vm659, %v661, %v657
        %v663 = vmul.f32 1.0, %v662
        %v664 = vrcp.pop %v600
        %v665 = vmul.f32 %v600, %v664
        %v666 = vsub.f32 1.0, %v665
        %v667 = vmul.f32 %v664, %v666
        %v668 = vadd.f32 %v664, %v667
        %vm669 = vweird.f32 %v600
        %vm670 = vweird.f32 %v664
        %vm671 = vmor %vm669, %vm670
        %v672 = vsel %vm671, %v664, %v668
        %v673 = vand.u32 2147483647, %v600
        %vm674 = vcmp.eq.f32.partialorder %v673, 8.507059e+37
        %v675 = vand.u32 %v600, 2147483648
        %v676 = vor.u32 1.1754944e-38, %v675
        %v677 = vsel %vm674, %v676, %v672
        %v678 = vmul.f32 1.0, %v677
        %v679 = vrcp.pop %v601
        %v680 = vmul.f32 %v601, %v679
        %v681 = vsub.f32 1.0, %v680
        %v682 = vmul.f32 %v679, %v681
        %v683 = vadd.f32 %v679, %v682
        %vm684 = vweird.f32 %v601
        %vm685 = vweird.f32 %v679
        %vm686 = vmor %vm684, %vm685
        %v687 = vsel %vm686, %v679, %v683
        %v688 = vand.u32 2147483647, %v601
        %vm689 = vcmp.eq.f32.partialorder %v688, 8.507059e+37
        %v690 = vand.u32 %v601, 2147483648
        %v691 = vor.u32 1.1754944e-38, %v690
        %v692 = vsel %vm689, %v691, %v687
        %v693 = vmul.f32 1.0, %v692
        %v694 = vrcp.pop %v602
        %v695 = vmul.f32 %v602, %v694
        %v696 = vsub.f32 1.0, %v695
        %v697 = vmul.f32 %v694, %v696
        %v698 = vadd.f32 %v694, %v697
        %vm699 = vweird.f32 %v602
        %vm700 = vweird.f32 %v694
        %vm701 = vmor %vm699, %vm700
        %v702 = vsel %vm701, %v694, %v698
        %v703 = vand.u32 2147483647, %v602
        %vm704 = vcmp.eq.f32.partialorder %v703, 8.507059e+37
        %v705 = vand.u32 %v602, 2147483648
        %v706 = vor.u32 1.1754944e-38, %v705
        %v707 = vsel %vm704, %v706, %v702
        %v708 = vmul.f32 1.0, %v707
        %v709 = vrcp.pop %v603
        %v710 = vmul.f32 %v603, %v709
        %v711 = vsub.f32 1.0, %v710
        %v712 = vmul.f32 %v709, %v711
        %v713 = vadd.f32 %v709, %v712
        %vm714 = vweird.f32 %v603
        %vm715 = vweird.f32 %v709
        %vm716 = vmor %vm714, %vm715
        %v717 = vsel %vm716, %v709, %v713
        %v718 = vand.u32 2147483647, %v603
        %vm719 = vcmp.eq.f32.partialorder %v718, 8.507059e+37
        %v720 = vand.u32 %v603, 2147483648
        %v721 = vor.u32 1.1754944e-38, %v720
        %v722 = vsel %vm719, %v721, %v717
        %v723 = vmul.f32 1.0, %v722
        %v724 = vmul.f32 %v618, %v275
        %v725 = vmul.f32 %v633, %v276
        %v726 = vmul.f32 %v648, %v277
        %v727 = vmul.f32 %v663, %v278
        %v728 = vmul.f32 %v678, %v279
        %v729 = vmul.f32 %v693, %v280
        %v730 = vmul.f32 %v708, %v281
        %v731 = vmul.f32 %v723, %v282
        %v732 = vadd.f32 %v724, %v275
        %v733 = vadd.f32 %v725, %v276
        %v734 = vadd.f32 %v726, %v277
        %v735 = vadd.f32 %v727, %v278
        %v736 = vadd.f32 %v728, %v279
        %v737 = vadd.f32 %v729, %v280
        %v738 = vadd.f32 %v730, %v281
        %v739 = vadd.f32 %v731, %v282
        %740 = vst [vmem:[%s262] sm:$0xff] %v732
        %741 = vst [vmem:[%s262 + $0x8] sm:$0xff] %v733
        %742 = vst [vmem:[%s262 + $0x10] sm:$0xff] %v734
        %743 = vst [vmem:[%s262 + $0x18] sm:$0xff] %v735
        %744 = vst [vmem:[%s262 + $0x20] sm:$0xff] %v736
        %745 = vst [vmem:[%s262 + $0x28] sm:$0xff] %v737
        %746 = vst [vmem:[%s262 + $0x30] sm:$0xff] %v738
        %747 = vst [vmem:[%s262 + $0x38] sm:$0xff] %v739
        %v748 = vld [vmem:[%s332] sm:$0xff]
        %v749 = vld [vmem:[%s332 + $0x8] sm:$0xff]
        %v750 = vld [vmem:[%s332 + $0x10] sm:$0xff]
        %v751 = vld [vmem:[%s332 + $0x18] sm:$0xff]
        %v752 = vld [vmem:[%s332 + $0x20] sm:$0xff]
        %v753 = vld [vmem:[%s332 + $0x28] sm:$0xff]
        %v754 = vld [vmem:[%s332 + $0x30] sm:$0xff]
        %v755 = vld [vmem:[%s332 + $0x38] sm:$0xff]
        %v756 = vsub.f32 %v408, %v359
        %v757 = vsub.f32 %v428, %v379
        %758 = vmatpush.msra.mxu0 0.0
        %759 = vmatpush.msra.mxu0 0.0
        %760 = vmatpush.msra.mxu0 0.0
        %761 = vmatpush.msra.mxu0 0.0
        %762 = vmatpush.msra.mxu0 0.0
        %763 = vmatpush.msra.mxu0 0.0
        %764 = vmatpush.msra.mxu0 0.0
        %765 = vmatpush.msra.mxu0 0.0
        %766 = vmatpush.msra.mxu0 0.0
        %767 = vmatpush.msra.mxu0 0.0
        %768 = vmatpush.msra.mxu0 0.0
        %769 = vmatpush.msra.mxu0 0.0
        %770 = vmatpush.msra.mxu0 0.0
        %771 = vmatpush.msra.mxu0 0.0
        %772 = vmatpush.msra.mxu0 0.0
        %773 = vmatpush.msra.mxu0 %v756
        %774 = vmatmul.f32.gmra.mxu0 %v503
        %v775 = vpop.f32.mrf.mxu0
        %v776 = vadd.f32 %v484, %v775
        %777 = vmatmul.f32.gmra.mxu0 %v506
        %v778 = vpop.f32.mrf.mxu0
        %v779 = vadd.f32 %v489, %v778
        %780 = vmatmul.f32.gmra.mxu0 %v509
        %v781 = vpop.f32.mrf.mxu0
        %v782 = vadd.f32 %v494, %v781
        %783 = vmatmul.f32.gmra.mxu0 %v512
        %v784 = vpop.f32.mrf.mxu0
        %v785 = vadd.f32 %v499, %v784
        %786 = vdwg.mxu0
        %787 = vmatpush.msra.mxu0 0.0
        %788 = vmatpush.msra.mxu0 0.0
        %789 = vmatpush.msra.mxu0 0.0
        %790 = vmatpush.msra.mxu0 0.0
        %791 = vmatpush.msra.mxu0 0.0
        %792 = vmatpush.msra.mxu0 0.0
        %793 = vmatpush.msra.mxu0 0.0
        %794 = vmatpush.msra.mxu0 0.0
        %795 = vmatpush.msra.mxu0 0.0
        %796 = vmatpush.msra.mxu0 0.0
        %797 = vmatpush.msra.mxu0 0.0
        %798 = vmatpush.msra.mxu0 0.0
        %799 = vmatpush.msra.mxu0 0.0
        %800 = vmatpush.msra.mxu0 0.0
        %801 = vmatpush.msra.mxu0 0.0
        %802 = vmatpush.msra.mxu0 %v757
        %803 = vmatmul.f32.gmra.mxu0 %v503
        %v804 = vpop.f32.mrf.mxu0
        %v805 = vadd.f32 %v484, %v804
        %806 = vmatmul.f32.gmra.mxu0 %v506
        %v807 = vpop.f32.mrf.mxu0
        %v808 = vadd.f32 %v489, %v807
        %809 = vmatmul.f32.gmra.mxu0 %v509
        %v810 = vpop.f32.mrf.mxu0
        %v811 = vadd.f32 %v494, %v810
        %812 = vmatmul.f32.gmra.mxu0 %v512
        %v813 = vpop.f32.mrf.mxu0
        %v814 = vadd.f32 %v499, %v813
        %815 = vdwg.mxu0
        %v816 = vsub.f32 0.0, %v776
        %v817 = vsub.f32 0.0, %v805
        %v818 = vsub.f32 0.0, %v779
        %v819 = vsub.f32 0.0, %v808
        %v820 = vsub.f32 0.0, %v782
        %v821 = vsub.f32 0.0, %v811
        %v822 = vsub.f32 0.0, %v785
        %v823 = vsub.f32 0.0, %v814
        %v824 = vmul.f32 %v816, 1.442695
        %v825 = vpow.pop %v824
        %v826 = vmul.f32 %v817, 1.442695
        %v827 = vpow.pop %v826
        %v828 = vmul.f32 %v818, 1.442695
        %v829 = vpow.pop %v828
        %v830 = vmul.f32 %v819, 1.442695
        %v831 = vpow.pop %v830
        %v832 = vmul.f32 %v820, 1.442695
        %v833 = vpow.pop %v832
        %v834 = vmul.f32 %v821, 1.442695
        %v835 = vpow.pop %v834
        %v836 = vmul.f32 %v822, 1.442695
        %v837 = vpow.pop %v836
        %v838 = vmul.f32 %v823, 1.442695
        %v839 = vpow.pop %v838
        %v840 = vadd.f32 %v825, 1.0
        %v841 = vadd.f32 %v827, 1.0
        %v842 = vadd.f32 %v829, 1.0
        %v843 = vadd.f32 %v831, 1.0
        %v844 = vadd.f32 %v833, 1.0
        %v845 = vadd.f32 %v835, 1.0
        %v846 = vadd.f32 %v837, 1.0
        %v847 = vadd.f32 %v839, 1.0
        %v848 = vrcp.pop %v840
        %v849 = vmul.f32 %v840, %v848
        %v850 = vsub.f32 1.0, %v849
        %v851 = vmul.f32 %v848, %v850
        %v852 = vadd.f32 %v848, %v851
        %vm853 = vweird.f32 %v840
        %vm854 = vweird.f32 %v848
        %vm855 = vmor %vm853, %vm854
        %v856 = vsel %vm855, %v848, %v852
        %v857 = vand.u32 2147483647, %v840
        %vm858 = vcmp.eq.f32.partialorder %v857, 8.507059e+37
        %v859 = vand.u32 %v840, 2147483648
        %v860 = vor.u32 1.1754944e-38, %v859
        %v861 = vsel %vm858, %v860, %v856
        %v862 = vmul.f32 1.0, %v861
        %v863 = vrcp.pop %v841
        %v864 = vmul.f32 %v841, %v863
        %v865 = vsub.f32 1.0, %v864
        %v866 = vmul.f32 %v863, %v865
        %v867 = vadd.f32 %v863, %v866
        %vm868 = vweird.f32 %v841
        %vm869 = vweird.f32 %v863
        %vm870 = vmor %vm868, %vm869
        %v871 = vsel %vm870, %v863, %v867
        %v872 = vand.u32 2147483647, %v841
        %vm873 = vcmp.eq.f32.partialorder %v872, 8.507059e+37
        %v874 = vand.u32 %v841, 2147483648
        %v875 = vor.u32 1.1754944e-38, %v874
        %v876 = vsel %vm873, %v875, %v871
        %v877 = vmul.f32 1.0, %v876
        %v878 = vrcp.pop %v842
        %v879 = vmul.f32 %v842, %v878
        %v880 = vsub.f32 1.0, %v879
        %v881 = vmul.f32 %v878, %v880
        %v882 = vadd.f32 %v878, %v881
        %vm883 = vweird.f32 %v842
        %vm884 = vweird.f32 %v878
        %vm885 = vmor %vm883, %vm884
        %v886 = vsel %vm885, %v878, %v882
        %v887 = vand.u32 2147483647, %v842
        %vm888 = vcmp.eq.f32.partialorder %v887, 8.507059e+37
        %v889 = vand.u32 %v842, 2147483648
        %v890 = vor.u32 1.1754944e-38, %v889
        %v891 = vsel %vm888, %v890, %v886
        %v892 = vmul.f32 1.0, %v891
        %v893 = vrcp.pop %v843
        %v894 = vmul.f32 %v843, %v893
        %v895 = vsub.f32 1.0, %v894
        %v896 = vmul.f32 %v893, %v895
        %v897 = vadd.f32 %v893, %v896
        %vm898 = vweird.f32 %v843
        %vm899 = vweird.f32 %v893
        %vm900 = vmor %vm898, %vm899
        %v901 = vsel %vm900, %v893, %v897
        %v902 = vand.u32 2147483647, %v843
        %vm903 = vcmp.eq.f32.partialorder %v902, 8.507059e+37
        %v904 = vand.u32 %v843, 2147483648
        %v905 = vor.u32 1.1754944e-38, %v904
        %v906 = vsel %vm903, %v905, %v901
        %v907 = vmul.f32 1.0, %v906
        %v908 = vrcp.pop %v844
        %v909 = vmul.f32 %v844, %v908
        %v910 = vsub.f32 1.0, %v909
        %v911 = vmul.f32 %v908, %v910
        %v912 = vadd.f32 %v908, %v911
        %vm913 = vweird.f32 %v844
        %vm914 = vweird.f32 %v908
        %vm915 = vmor %vm913, %vm914
        %v916 = vsel %vm915, %v908, %v912
        %v917 = vand.u32 2147483647, %v844
        %vm918 = vcmp.eq.f32.partialorder %v917, 8.507059e+37
        %v919 = vand.u32 %v844, 2147483648
        %v920 = vor.u32 1.1754944e-38, %v919
        %v921 = vsel %vm918, %v920, %v916
        %v922 = vmul.f32 1.0, %v921
        %v923 = vrcp.pop %v845
        %v924 = vmul.f32 %v845, %v923
        %v925 = vsub.f32 1.0, %v924
        %v926 = vmul.f32 %v923, %v925
        %v927 = vadd.f32 %v923, %v926
        %vm928 = vweird.f32 %v845
        %vm929 = vweird.f32 %v923
        %vm930 = vmor %vm928, %vm929
        %v931 = vsel %vm930, %v923, %v927
        %v932 = vand.u32 2147483647, %v845
        %vm933 = vcmp.eq.f32.partialorder %v932, 8.507059e+37
        %v934 = vand.u32 %v845, 2147483648
        %v935 = vor.u32 1.1754944e-38, %v934
        %v936 = vsel %vm933, %v935, %v931
        %v937 = vmul.f32 1.0, %v936
        %v938 = vrcp.pop %v846
        %v939 = vmul.f32 %v846, %v938
        %v940 = vsub.f32 1.0, %v939
        %v941 = vmul.f32 %v938, %v940
        %v942 = vadd.f32 %v938, %v941
        %vm943 = vweird.f32 %v846
        %vm944 = vweird.f32 %v938
        %vm945 = vmor %vm943, %vm944
        %v946 = vsel %vm945, %v938, %v942
        %v947 = vand.u32 2147483647, %v846
        %vm948 = vcmp.eq.f32.partialorder %v947, 8.507059e+37
        %v949 = vand.u32 %v846, 2147483648
        %v950 = vor.u32 1.1754944e-38, %v949
        %v951 = vsel %vm948, %v950, %v946
        %v952 = vmul.f32 1.0, %v951
        %v953 = vrcp.pop %v847
        %v954 = vmul.f32 %v847, %v953
        %v955 = vsub.f32 1.0, %v954
        %v956 = vmul.f32 %v953, %v955
        %v957 = vadd.f32 %v953, %v956
        %vm958 = vweird.f32 %v847
        %vm959 = vweird.f32 %v953
        %vm960 = vmor %vm958, %vm959
        %v961 = vsel %vm960, %v953, %v957
        %v962 = vand.u32 2147483647, %v847
        %vm963 = vcmp.eq.f32.partialorder %v962, 8.507059e+37
        %v964 = vand.u32 %v847, 2147483648
        %v965 = vor.u32 1.1754944e-38, %v964
        %v966 = vsel %vm963, %v965, %v961
        %v967 = vmul.f32 1.0, %v966
        %v968 = vmul.f32 %v862, %v748
        %v969 = vmul.f32 %v877, %v749
        %v970 = vmul.f32 %v892, %v750
        %v971 = vmul.f32 %v907, %v751
        %v972 = vmul.f32 %v922, %v752
        %v973 = vmul.f32 %v937, %v753
        %v974 = vmul.f32 %v952, %v754
        %v975 = vmul.f32 %v967, %v755
        %v976 = vadd.f32 %v968, %v748
        %v977 = vadd.f32 %v969, %v749
        %v978 = vadd.f32 %v970, %v750
        %v979 = vadd.f32 %v971, %v751
        %v980 = vadd.f32 %v972, %v752
        %v981 = vadd.f32 %v973, %v753
        %v982 = vadd.f32 %v974, %v754
        %v983 = vadd.f32 %v975, %v755
        %s984 = scalar_lea.vmem %s262, 64 [#allocation5]
        %985 = vst [vmem:[%s984] sm:$0xff] %v976
        %986 = vst [vmem:[%s984 + $0x8] sm:$0xff] %v977
        %987 = vst [vmem:[%s984 + $0x10] sm:$0xff] %v978
        %988 = vst [vmem:[%s984 + $0x18] sm:$0xff] %v979
        %989 = vst [vmem:[%s984 + $0x20] sm:$0xff] %v980
        %990 = vst [vmem:[%s984 + $0x28] sm:$0xff] %v981
        %991 = vst [vmem:[%s984 + $0x30] sm:$0xff] %v982
        %992 = vst [vmem:[%s984 + $0x38] sm:$0xff] %v983
        %v993 = vld [vmem:[%s381] sm:$0xff]
        %v994 = vld [vmem:[%s381 + $0x8] sm:$0xff]
        %v995 = vld [vmem:[%s381 + $0x10] sm:$0xff]
        %v996 = vld [vmem:[%s381 + $0x18] sm:$0xff]
        %v997 = vld [vmem:[%s381 + $0x20] sm:$0xff]
        %v998 = vld [vmem:[%s381 + $0x28] sm:$0xff]
        %v999 = vld [vmem:[%s381 + $0x30] sm:$0xff]
        %v1000 = vld [vmem:[%s381 + $0x38] sm:$0xff]
        %v1001 = vsub.f32 %v457, %v408
        %v1002 = vsub.f32 %v477, %v428
        %1003 = vmatpush.msra.mxu0 0.0
        %1004 = vmatpush.msra.mxu0 0.0
        %1005 = vmatpush.msra.mxu0 0.0
        %1006 = vmatpush.msra.mxu0 0.0
        %1007 = vmatpush.msra.mxu0 0.0
        %1008 = vmatpush.msra.mxu0 0.0
        %1009 = vmatpush.msra.mxu0 0.0
        %1010 = vmatpush.msra.mxu0 0.0
        %1011 = vmatpush.msra.mxu0 0.0
        %1012 = vmatpush.msra.mxu0 0.0
        %1013 = vmatpush.msra.mxu0 0.0
        %1014 = vmatpush.msra.mxu0 0.0
        %1015 = vmatpush.msra.mxu0 0.0
        %1016 = vmatpush.msra.mxu0 0.0
        %1017 = vmatpush.msra.mxu0 0.0
        %1018 = vmatpush.msra.mxu0 %v1001
        %1019 = vmatmul.f32.gmra.mxu0 %v503
        %v1020 = vpop.f32.mrf.mxu0
        %v1021 = vadd.f32 %v484, %v1020
        %1022 = vmatmul.f32.gmra.mxu0 %v506
        %v1023 = vpop.f32.mrf.mxu0
        %v1024 = vadd.f32 %v489, %v1023
        %1025 = vmatmul.f32.gmra.mxu0 %v509
        %v1026 = vpop.f32.mrf.mxu0
        %v1027 = vadd.f32 %v494, %v1026
        %1028 = vmatmul.f32.gmra.mxu0 %v512
        %v1029 = vpop.f32.mrf.mxu0
        %v1030 = vadd.f32 %v499, %v1029
        %1031 = vdwg.mxu0
        %1032 = vmatpush.msra.mxu0 0.0
        %1033 = vmatpush.msra.mxu0 0.0
        %1034 = vmatpush.msra.mxu0 0.0
        %1035 = vmatpush.msra.mxu0 0.0
        %1036 = vmatpush.msra.mxu0 0.0
        %1037 = vmatpush.msra.mxu0 0.0
        %1038 = vmatpush.msra.mxu0 0.0
        %1039 = vmatpush.msra.mxu0 0.0
        %1040 = vmatpush.msra.mxu0 0.0
        %1041 = vmatpush.msra.mxu0 0.0
        %1042 = vmatpush.msra.mxu0 0.0
        %1043 = vmatpush.msra.mxu0 0.0
        %1044 = vmatpush.msra.mxu0 0.0
        %1045 = vmatpush.msra.mxu0 0.0
        %1046 = vmatpush.msra.mxu0 0.0
        %1047 = vmatpush.msra.mxu0 %v1002
        %1048 = vmatmul.f32.gmra.mxu0 %v503
        %v1049 = vpop.f32.mrf.mxu0
        %v1050 = vadd.f32 %v484, %v1049
        %1051 = vmatmul.f32.gmra.mxu0 %v506
        %v1052 = vpop.f32.mrf.mxu0
        %v1053 = vadd.f32 %v489, %v1052
        %1054 = vmatmul.f32.gmra.mxu0 %v509
        %v1055 = vpop.f32.mrf.mxu0
        %v1056 = vadd.f32 %v494, %v1055
        %1057 = vmatmul.f32.gmra.mxu0 %v512
        %v1058 = vpop.f32.mrf.mxu0
        %v1059 = vadd.f32 %v499, %v1058
        %1060 = vdwg.mxu0
        %v1061 = vsub.f32 0.0, %v1021
        %v1062 = vsub.f32 0.0, %v1050
        %v1063 = vsub.f32 0.0, %v1024
        %v1064 = vsub.f32 0.0, %v1053
        %v1065 = vsub.f32 0.0, %v1027
        %v1066 = vsub.f32 0.0, %v1056
        %v1067 = vsub.f32 0.0, %v1030
        %v1068 = vsub.f32 0.0, %v1059
        %v1069 = vmul.f32 %v1061, 1.442695
        %v1070 = vpow.pop %v1069
        %v1071 = vmul.f32 %v1062, 1.442695
        %v1072 = vpow.pop %v1071
        %v1073 = vmul.f32 %v1063, 1.442695
        %v1074 = vpow.pop %v1073
        %v1075 = vmul.f32 %v1064, 1.442695
        %v1076 = vpow.pop %v1075
        %v1077 = vmul.f32 %v1065, 1.442695
        %v1078 = vpow.pop %v1077
        %v1079 = vmul.f32 %v1066, 1.442695
        %v1080 = vpow.pop %v1079
        %v1081 = vmul.f32 %v1067, 1.442695
        %v1082 = vpow.pop %v1081
        %v1083 = vmul.f32 %v1068, 1.442695
        %v1084 = vpow.pop %v1083
        %v1085 = vadd.f32 %v1070, 1.0
        %v1086 = vadd.f32 %v1072, 1.0
        %v1087 = vadd.f32 %v1074, 1.0
        %v1088 = vadd.f32 %v1076, 1.0
        %v1089 = vadd.f32 %v1078, 1.0
        %v1090 = vadd.f32 %v1080, 1.0
        %v1091 = vadd.f32 %v1082, 1.0
        %v1092 = vadd.f32 %v1084, 1.0
        %v1093 = vrcp.pop %v1085
        %v1094 = vmul.f32 %v1085, %v1093
        %v1095 = vsub.f32 1.0, %v1094
        %v1096 = vmul.f32 %v1093, %v1095
        %v1097 = vadd.f32 %v1093, %v1096
        %vm1098 = vweird.f32 %v1085
        %vm1099 = vweird.f32 %v1093
        %vm1100 = vmor %vm1098, %vm1099
        %v1101 = vsel %vm1100, %v1093, %v1097
        %v1102 = vand.u32 2147483647, %v1085
        %vm1103 = vcmp.eq.f32.partialorder %v1102, 8.507059e+37
        %v1104 = vand.u32 %v1085, 2147483648
        %v1105 = vor.u32 1.1754944e-38, %v1104
        %v1106 = vsel %vm1103, %v1105, %v1101
        %v1107 = vmul.f32 1.0, %v1106
        %v1108 = vrcp.pop %v1086
        %v1109 = vmul.f32 %v1086, %v1108
        %v1110 = vsub.f32 1.0, %v1109
        %v1111 = vmul.f32 %v1108, %v1110
        %v1112 = vadd.f32 %v1108, %v1111
        %vm1113 = vweird.f32 %v1086
        %vm1114 = vweird.f32 %v1108
        %vm1115 = vmor %vm1113, %vm1114
        %v1116 = vsel %vm1115, %v1108, %v1112
        %v1117 = vand.u32 2147483647, %v1086
        %vm1118 = vcmp.eq.f32.partialorder %v1117, 8.507059e+37
        %v1119 = vand.u32 %v1086, 2147483648
        %v1120 = vor.u32 1.1754944e-38, %v1119
        %v1121 = vsel %vm1118, %v1120, %v1116
        %v1122 = vmul.f32 1.0, %v1121
        %v1123 = vrcp.pop %v1087
        %v1124 = vmul.f32 %v1087, %v1123
        %v1125 = vsub.f32 1.0, %v1124
        %v1126 = vmul.f32 %v1123, %v1125
        %v1127 = vadd.f32 %v1123, %v1126
        %vm1128 = vweird.f32 %v1087
        %vm1129 = vweird.f32 %v1123
        %vm1130 = vmor %vm1128, %vm1129
        %v1131 = vsel %vm1130, %v1123, %v1127
        %v1132 = vand.u32 2147483647, %v1087
        %vm1133 = vcmp.eq.f32.partialorder %v1132, 8.507059e+37
        %v1134 = vand.u32 %v1087, 2147483648
        %v1135 = vor.u32 1.1754944e-38, %v1134
        %v1136 = vsel %vm1133, %v1135, %v1131
        %v1137 = vmul.f32 1.0, %v1136
        %v1138 = vrcp.pop %v1088
        %v1139 = vmul.f32 %v1088, %v1138
        %v1140 = vsub.f32 1.0, %v1139
        %v1141 = vmul.f32 %v1138, %v1140
        %v1142 = vadd.f32 %v1138, %v1141
        %vm1143 = vweird.f32 %v1088
        %vm1144 = vweird.f32 %v1138
        %vm1145 = vmor %vm1143, %vm1144
        %v1146 = vsel %vm1145, %v1138, %v1142
        %v1147 = vand.u32 2147483647, %v1088
        %vm1148 = vcmp.eq.f32.partialorder %v1147, 8.507059e+37
        %v1149 = vand.u32 %v1088, 2147483648
        %v1150 = vor.u32 1.1754944e-38, %v1149
        %v1151 = vsel %vm1148, %v1150, %v1146
        %v1152 = vmul.f32 1.0, %v1151
        %v1153 = vrcp.pop %v1089
        %v1154 = vmul.f32 %v1089, %v1153
        %v1155 = vsub.f32 1.0, %v1154
        %v1156 = vmul.f32 %v1153, %v1155
        %v1157 = vadd.f32 %v1153, %v1156
        %vm1158 = vweird.f32 %v1089
        %vm1159 = vweird.f32 %v1153
        %vm1160 = vmor %vm1158, %vm1159
        %v1161 = vsel %vm1160, %v1153, %v1157
        %v1162 = vand.u32 2147483647, %v1089
        %vm1163 = vcmp.eq.f32.partialorder %v1162, 8.507059e+37
        %v1164 = vand.u32 %v1089, 2147483648
        %v1165 = vor.u32 1.1754944e-38, %v1164
        %v1166 = vsel %vm1163, %v1165, %v1161
        %v1167 = vmul.f32 1.0, %v1166
        %v1168 = vrcp.pop %v1090
        %v1169 = vmul.f32 %v1090, %v1168
        %v1170 = vsub.f32 1.0, %v1169
        %v1171 = vmul.f32 %v1168, %v1170
        %v1172 = vadd.f32 %v1168, %v1171
        %vm1173 = vweird.f32 %v1090
        %vm1174 = vweird.f32 %v1168
        %vm1175 = vmor %vm1173, %vm1174
        %v1176 = vsel %vm1175, %v1168, %v1172
        %v1177 = vand.u32 2147483647, %v1090
        %vm1178 = vcmp.eq.f32.partialorder %v1177, 8.507059e+37
        %v1179 = vand.u32 %v1090, 2147483648
        %v1180 = vor.u32 1.1754944e-38, %v1179
        %v1181 = vsel %vm1178, %v1180, %v1176
        %v1182 = vmul.f32 1.0, %v1181
        %v1183 = vrcp.pop %v1091
        %v1184 = vmul.f32 %v1091, %v1183
        %v1185 = vsub.f32 1.0, %v1184
        %v1186 = vmul.f32 %v1183, %v1185
        %v1187 = vadd.f32 %v1183, %v1186
        %vm1188 = vweird.f32 %v1091
        %vm1189 = vweird.f32 %v1183
        %vm1190 = vmor %vm1188, %vm1189
        %v1191 = vsel %vm1190, %v1183, %v1187
        %v1192 = vand.u32 2147483647, %v1091
        %vm1193 = vcmp.eq.f32.partialorder %v1192, 8.507059e+37
        %v1194 = vand.u32 %v1091, 2147483648
        %v1195 = vor.u32 1.1754944e-38, %v1194
        %v1196 = vsel %vm1193, %v1195, %v1191
        %v1197 = vmul.f32 1.0, %v1196
        %v1198 = vrcp.pop %v1092
        %v1199 = vmul.f32 %v1092, %v1198
        %v1200 = vsub.f32 1.0, %v1199
        %v1201 = vmul.f32 %v1198, %v1200
        %v1202 = vadd.f32 %v1198, %v1201
        %vm1203 = vweird.f32 %v1092
        %vm1204 = vweird.f32 %v1198
        %vm1205 = vmor %vm1203, %vm1204
        %v1206 = vsel %vm1205, %v1198, %v1202
        %v1207 = vand.u32 2147483647, %v1092
        %vm1208 = vcmp.eq.f32.partialorder %v1207, 8.507059e+37
        %v1209 = vand.u32 %v1092, 2147483648
        %v1210 = vor.u32 1.1754944e-38, %v1209
        %v1211 = vsel %vm1208, %v1210, %v1206
        %v1212 = vmul.f32 1.0, %v1211
        %v1213 = vmul.f32 %v1107, %v993
        %v1214 = vmul.f32 %v1122, %v994
        %v1215 = vmul.f32 %v1137, %v995
        %v1216 = vmul.f32 %v1152, %v996
        %v1217 = vmul.f32 %v1167, %v997
        %v1218 = vmul.f32 %v1182, %v998
        %v1219 = vmul.f32 %v1197, %v999
        %v1220 = vmul.f32 %v1212, %v1000
        %v1221 = vadd.f32 %v1213, %v993
        %v1222 = vadd.f32 %v1214, %v994
        %v1223 = vadd.f32 %v1215, %v995
        %v1224 = vadd.f32 %v1216, %v996
        %v1225 = vadd.f32 %v1217, %v997
        %v1226 = vadd.f32 %v1218, %v998
        %v1227 = vadd.f32 %v1219, %v999
        %v1228 = vadd.f32 %v1220, %v1000
        %s1229 = scalar_lea.vmem %s262, 128 [#allocation5]
        %1230 = vst [vmem:[%s1229] sm:$0xff] %v1221
        %1231 = vst [vmem:[%s1229 + $0x8] sm:$0xff] %v1222
        %1232 = vst [vmem:[%s1229 + $0x10] sm:$0xff] %v1223
        %1233 = vst [vmem:[%s1229 + $0x18] sm:$0xff] %v1224
        %1234 = vst [vmem:[%s1229 + $0x20] sm:$0xff] %v1225
        %1235 = vst [vmem:[%s1229 + $0x28] sm:$0xff] %v1226
        %1236 = vst [vmem:[%s1229 + $0x30] sm:$0xff] %v1227
        %1237 = vst [vmem:[%s1229 + $0x38] sm:$0xff] %v1228
        %v1238 = vld [vmem:[%s430] sm:$0xff]
        %v1239 = vld [vmem:[%s430 + $0x8] sm:$0xff]
        %v1240 = vld [vmem:[%s430 + $0x10] sm:$0xff]
        %v1241 = vld [vmem:[%s430 + $0x18] sm:$0xff]
        %v1242 = vld [vmem:[%s430 + $0x20] sm:$0xff]
        %v1243 = vld [vmem:[%s430 + $0x28] sm:$0xff]
        %v1244 = vld [vmem:[%s430 + $0x30] sm:$0xff]
        %v1245 = vld [vmem:[%s430 + $0x38] sm:$0xff]
        %v1246 = vsub.f32 0.0, %v457
        %v1247 = vsub.f32 0.0, %v477
        %1248 = vmatpush.msra.mxu0 0.0
        %1249 = vmatpush.msra.mxu0 0.0
        %1250 = vmatpush.msra.mxu0 0.0
        %1251 = vmatpush.msra.mxu0 0.0
        %1252 = vmatpush.msra.mxu0 0.0
        %1253 = vmatpush.msra.mxu0 0.0
        %1254 = vmatpush.msra.mxu0 0.0
        %1255 = vmatpush.msra.mxu0 0.0
        %1256 = vmatpush.msra.mxu0 0.0
        %1257 = vmatpush.msra.mxu0 0.0
        %1258 = vmatpush.msra.mxu0 0.0
        %1259 = vmatpush.msra.mxu0 0.0
        %1260 = vmatpush.msra.mxu0 0.0
        %1261 = vmatpush.msra.mxu0 0.0
        %1262 = vmatpush.msra.mxu0 0.0
        %1263 = vmatpush.msra.mxu0 %v1246
        %1264 = vmatmul.f32.gmra.mxu0 %v503
        %v1265 = vpop.f32.mrf.mxu0
        %v1266 = vadd.f32 %v484, %v1265
        %1267 = vmatmul.f32.gmra.mxu0 %v506
        %v1268 = vpop.f32.mrf.mxu0
        %v1269 = vadd.f32 %v489, %v1268
        %1270 = vmatmul.f32.gmra.mxu0 %v509
        %v1271 = vpop.f32.mrf.mxu0
        %v1272 = vadd.f32 %v494, %v1271
        %1273 = vmatmul.f32.gmra.mxu0 %v512
        %v1274 = vpop.f32.mrf.mxu0
        %v1275 = vadd.f32 %v499, %v1274
        %1276 = vdwg.mxu0
        %1277 = vmatpush.msra.mxu0 0.0
        %1278 = vmatpush.msra.mxu0 0.0
        %1279 = vmatpush.msra.mxu0 0.0
        %1280 = vmatpush.msra.mxu0 0.0
        %1281 = vmatpush.msra.mxu0 0.0
        %1282 = vmatpush.msra.mxu0 0.0
        %1283 = vmatpush.msra.mxu0 0.0
        %1284 = vmatpush.msra.mxu0 0.0
        %1285 = vmatpush.msra.mxu0 0.0
        %1286 = vmatpush.msra.mxu0 0.0
        %1287 = vmatpush.msra.mxu0 0.0
        %1288 = vmatpush.msra.mxu0 0.0
        %1289 = vmatpush.msra.mxu0 0.0
        %1290 = vmatpush.msra.mxu0 0.0
        %1291 = vmatpush.msra.mxu0 0.0
        %1292 = vmatpush.msra.mxu0 %v1247
        %1293 = vmatmul.f32.gmra.mxu0 %v503
        %v1294 = vpop.f32.mrf.mxu0
        %v1295 = vadd.f32 %v484, %v1294
        %1296 = vmatmul.f32.gmra.mxu0 %v506
        %v1297 = vpop.f32.mrf.mxu0
        %v1298 = vadd.f32 %v489, %v1297
        %1299 = vmatmul.f32.gmra.mxu0 %v509
        %v1300 = vpop.f32.mrf.mxu0
        %v1301 = vadd.f32 %v494, %v1300
        %1302 = vmatmul.f32.gmra.mxu0 %v512
        %v1303 = vpop.f32.mrf.mxu0
        %v1304 = vadd.f32 %v499, %v1303
        %1305 = vdwg.mxu0
        %v1306 = vsub.f32 0.0, %v1266
        %v1307 = vsub.f32 0.0, %v1295
        %v1308 = vsub.f32 0.0, %v1269
        %v1309 = vsub.f32 0.0, %v1298
        %v1310 = vsub.f32 0.0, %v1272
        %v1311 = vsub.f32 0.0, %v1301
        %v1312 = vsub.f32 0.0, %v1275
        %v1313 = vsub.f32 0.0, %v1304
        %v1314 = vmul.f32 %v1306, 1.442695
        %v1315 = vpow.pop %v1314
        %v1316 = vmul.f32 %v1307, 1.442695
        %v1317 = vpow.pop %v1316
        %v1318 = vmul.f32 %v1308, 1.442695
        %v1319 = vpow.pop %v1318
        %v1320 = vmul.f32 %v1309, 1.442695
        %v1321 = vpow.pop %v1320
        %v1322 = vmul.f32 %v1310, 1.442695
        %v1323 = vpow.pop %v1322
        %v1324 = vmul.f32 %v1311, 1.442695
        %v1325 = vpow.pop %v1324
        %v1326 = vmul.f32 %v1312, 1.442695
        %v1327 = vpow.pop %v1326
        %v1328 = vmul.f32 %v1313, 1.442695
        %v1329 = vpow.pop %v1328
        %v1330 = vadd.f32 %v1315, 1.0
        %v1331 = vadd.f32 %v1317, 1.0
        %v1332 = vadd.f32 %v1319, 1.0
        %v1333 = vadd.f32 %v1321, 1.0
        %v1334 = vadd.f32 %v1323, 1.0
        %v1335 = vadd.f32 %v1325, 1.0
        %v1336 = vadd.f32 %v1327, 1.0
        %v1337 = vadd.f32 %v1329, 1.0
        %v1338 = vrcp.pop %v1330
        %v1339 = vmul.f32 %v1330, %v1338
        %v1340 = vsub.f32 1.0, %v1339
        %v1341 = vmul.f32 %v1338, %v1340
        %v1342 = vadd.f32 %v1338, %v1341
        %vm1343 = vweird.f32 %v1330
        %vm1344 = vweird.f32 %v1338
        %vm1345 = vmor %vm1343, %vm1344
        %v1346 = vsel %vm1345, %v1338, %v1342
        %v1347 = vand.u32 2147483647, %v1330
        %vm1348 = vcmp.eq.f32.partialorder %v1347, 8.507059e+37
        %v1349 = vand.u32 %v1330, 2147483648
        %v1350 = vor.u32 1.1754944e-38, %v1349
        %v1351 = vsel %vm1348, %v1350, %v1346
        %v1352 = vmul.f32 1.0, %v1351
        %v1353 = vrcp.pop %v1331
        %v1354 = vmul.f32 %v1331, %v1353
        %v1355 = vsub.f32 1.0, %v1354
        %v1356 = vmul.f32 %v1353, %v1355
        %v1357 = vadd.f32 %v1353, %v1356
        %vm1358 = vweird.f32 %v1331
        %vm1359 = vweird.f32 %v1353
        %vm1360 = vmor %vm1358, %vm1359
        %v1361 = vsel %vm1360, %v1353, %v1357
        %v1362 = vand.u32 2147483647, %v1331
        %vm1363 = vcmp.eq.f32.partialorder %v1362, 8.507059e+37
        %v1364 = vand.u32 %v1331, 2147483648
        %v1365 = vor.u32 1.1754944e-38, %v1364
        %v1366 = vsel %vm1363, %v1365, %v1361
        %v1367 = vmul.f32 1.0, %v1366
        %v1368 = vrcp.pop %v1332
        %v1369 = vmul.f32 %v1332, %v1368
        %v1370 = vsub.f32 1.0, %v1369
        %v1371 = vmul.f32 %v1368, %v1370
        %v1372 = vadd.f32 %v1368, %v1371
        %vm1373 = vweird.f32 %v1332
        %vm1374 = vweird.f32 %v1368
        %vm1375 = vmor %vm1373, %vm1374
        %v1376 = vsel %vm1375, %v1368, %v1372
        %v1377 = vand.u32 2147483647, %v1332
        %vm1378 = vcmp.eq.f32.partialorder %v1377, 8.507059e+37
        %v1379 = vand.u32 %v1332, 2147483648
        %v1380 = vor.u32 1.1754944e-38, %v1379
        %v1381 = vsel %vm1378, %v1380, %v1376
        %v1382 = vmul.f32 1.0, %v1381
        %v1383 = vrcp.pop %v1333
        %v1384 = vmul.f32 %v1333, %v1383
        %v1385 = vsub.f32 1.0, %v1384
        %v1386 = vmul.f32 %v1383, %v1385
        %v1387 = vadd.f32 %v1383, %v1386
        %vm1388 = vweird.f32 %v1333
        %vm1389 = vweird.f32 %v1383
        %vm1390 = vmor %vm1388, %vm1389
        %v1391 = vsel %vm1390, %v1383, %v1387
        %v1392 = vand.u32 2147483647, %v1333
        %vm1393 = vcmp.eq.f32.partialorder %v1392, 8.507059e+37
        %v1394 = vand.u32 %v1333, 2147483648
        %v1395 = vor.u32 1.1754944e-38, %v1394
        %v1396 = vsel %vm1393, %v1395, %v1391
        %v1397 = vmul.f32 1.0, %v1396
        %v1398 = vrcp.pop %v1334
        %v1399 = vmul.f32 %v1334, %v1398
        %v1400 = vsub.f32 1.0, %v1399
        %v1401 = vmul.f32 %v1398, %v1400
        %v1402 = vadd.f32 %v1398, %v1401
        %vm1403 = vweird.f32 %v1334
        %vm1404 = vweird.f32 %v1398
        %vm1405 = vmor %vm1403, %vm1404
        %v1406 = vsel %vm1405, %v1398, %v1402
        %v1407 = vand.u32 2147483647, %v1334
        %vm1408 = vcmp.eq.f32.partialorder %v1407, 8.507059e+37
        %v1409 = vand.u32 %v1334, 2147483648
        %v1410 = vor.u32 1.1754944e-38, %v1409
        %v1411 = vsel %vm1408, %v1410, %v1406
        %v1412 = vmul.f32 1.0, %v1411
        %v1413 = vrcp.pop %v1335
        %v1414 = vmul.f32 %v1335, %v1413
        %v1415 = vsub.f32 1.0, %v1414
        %v1416 = vmul.f32 %v1413, %v1415
        %v1417 = vadd.f32 %v1413, %v1416
        %vm1418 = vweird.f32 %v1335
        %vm1419 = vweird.f32 %v1413
        %vm1420 = vmor %vm1418, %vm1419
        %v1421 = vsel %vm1420, %v1413, %v1417
        %v1422 = vand.u32 2147483647, %v1335
        %vm1423 = vcmp.eq.f32.partialorder %v1422, 8.507059e+37
        %v1424 = vand.u32 %v1335, 2147483648
        %v1425 = vor.u32 1.1754944e-38, %v1424
        %v1426 = vsel %vm1423, %v1425, %v1421
        %v1427 = vmul.f32 1.0, %v1426
        %v1428 = vrcp.pop %v1336
        %v1429 = vmul.f32 %v1336, %v1428
        %v1430 = vsub.f32 1.0, %v1429
        %v1431 = vmul.f32 %v1428, %v1430
        %v1432 = vadd.f32 %v1428, %v1431
        %vm1433 = vweird.f32 %v1336
        %vm1434 = vweird.f32 %v1428
        %vm1435 = vmor %vm1433, %vm1434
        %v1436 = vsel %vm1435, %v1428, %v1432
        %v1437 = vand.u32 2147483647, %v1336
        %vm1438 = vcmp.eq.f32.partialorder %v1437, 8.507059e+37
        %v1439 = vand.u32 %v1336, 2147483648
        %v1440 = vor.u32 1.1754944e-38, %v1439
        %v1441 = vsel %vm1438, %v1440, %v1436
        %v1442 = vmul.f32 1.0, %v1441
        %v1443 = vrcp.pop %v1337
        %v1444 = vmul.f32 %v1337, %v1443
        %v1445 = vsub.f32 1.0, %v1444
        %v1446 = vmul.f32 %v1443, %v1445
        %v1447 = vadd.f32 %v1443, %v1446
        %vm1448 = vweird.f32 %v1337
        %vm1449 = vweird.f32 %v1443
        %vm1450 = vmor %vm1448, %vm1449
        %v1451 = vsel %vm1450, %v1443, %v1447
        %v1452 = vand.u32 2147483647, %v1337
        %vm1453 = vcmp.eq.f32.partialorder %v1452, 8.507059e+37
        %v1454 = vand.u32 %v1337, 2147483648
        %v1455 = vor.u32 1.1754944e-38, %v1454
        %v1456 = vsel %vm1453, %v1455, %v1451
        %v1457 = vmul.f32 1.0, %v1456
        %v1458 = vmul.f32 %v1352, %v1238
        %v1459 = vmul.f32 %v1367, %v1239
        %v1460 = vmul.f32 %v1382, %v1240
        %v1461 = vmul.f32 %v1397, %v1241
        %v1462 = vmul.f32 %v1412, %v1242
        %v1463 = vmul.f32 %v1427, %v1243
        %v1464 = vmul.f32 %v1442, %v1244
        %v1465 = vmul.f32 %v1457, %v1245
        %v1466 = vadd.f32 %v1458, %v1238
        %v1467 = vadd.f32 %v1459, %v1239
        %v1468 = vadd.f32 %v1460, %v1240
        %v1469 = vadd.f32 %v1461, %v1241
        %v1470 = vadd.f32 %v1462, %v1242
        %v1471 = vadd.f32 %v1463, %v1243
        %v1472 = vadd.f32 %v1464, %v1244
        %v1473 = vadd.f32 %v1465, %v1245
        %s1474 = scalar_lea.vmem %s262, 192 [#allocation5]
        %1475 = vst [vmem:[%s1474] sm:$0xff] %v1466
        %1476 = vst [vmem:[%s1474 + $0x8] sm:$0xff] %v1467
        %1477 = vst [vmem:[%s1474 + $0x10] sm:$0xff] %v1468
        %1478 = vst [vmem:[%s1474 + $0x18] sm:$0xff] %v1469
        %1479 = vst [vmem:[%s1474 + $0x20] sm:$0xff] %v1470
        %1480 = vst [vmem:[%s1474 + $0x28] sm:$0xff] %v1471
        %1481 = vst [vmem:[%s1474 + $0x30] sm:$0xff] %v1472
        %1482 = vst [vmem:[%s1474 + $0x38] sm:$0xff] %v1473
        %s1483 = sand.u32 %s156, 1
        %s1484 = scalar_lea.sflag [#allocation4], %s1483
        %s1485 = sand.u32 %s156, 1
        %s1486 = smul.addr %s1485, 256
        %s1487 = scalar_lea.vmem [#allocation5], %s1486
        // Predicated region
        $region45: #{tpu_custom_call.1} parent=39 // pred_check
          %p1488 = pneg %p166
        $region46: #{tpu_custom_call.1} parent=39 // pred_check_branch
          %1490 = sbr.rel (%p1488) target = $region48
        $region47: #{tpu_custom_call.1} parent=39 // pred_region
          %s1491 = smul.u32 2, %s27
          %1493 = vsyncadd %s1484, 0
          %s1494 = smul.addr %s26, 32
          %s1495 = sadd.s32 %s1491, %s1494
          %s1496 = smul.addr %s1495, 8
          %s1497 = scalar_lea.hbm %s5, %s1496
          %s1498 = sshll.u32 %s1487, 4
          %s1499 = int_to_ptr.vmem [resolvable:$true] %s1498
          %s1500 = sshll.u32 %s1497, 4
          %s1501 = int_to_ptr.hbm [resolvable:$true] %s1500
          %1506 = dma.vmem_to_hbm [thread:$0]  %s1499, 4096, %s1501, %s1484, 256, 256, 16
        $region48: #{tpu_custom_call.1} parent=39 // pred_fallthru
          _
      $region40: #{tpu_custom_call.1} parent=5 // pred_fallthru
        _
      %p1507 = scmp.le.s32.totalorder 2, %s17
      // Predicated region
      $region49: #{tpu_custom_call.1} parent=5 // pred_check
        %p1508 = pneg %p1507
      $region50: #{tpu_custom_call.1} parent=5 // pred_check_branch
        %1510 = sbr.rel (%p1508) target = $region52
      $region51: #{tpu_custom_call.1} parent=5 // pred_region
        %s1511 = ssub.s32 %s17, 2
        // Predicated region
        $region53: #{tpu_custom_call.1} parent=51 // pred_check
          %p1512 = pneg %p172
        $region54: #{tpu_custom_call.1} parent=51 // pred_check_branch
          %1514 = sbr.rel (%p1512) target = $region56
        $region55: #{tpu_custom_call.1} parent=51 // pred_region
          %s1515 = sand.u32 %s157, 1
          %s1516 = scalar_lea.sflag [#allocation4], %s1515
          %s1517 = sand.u32 %s157, 1
          %s1518 = smul.addr %s1517, 256
          %s1519 = scalar_lea.vmem [#allocation5], %s1518
          %1521 = dma.done %s1516, 4096
        $region56: #{tpu_custom_call.1} parent=51 // pred_fallthru
          _
      $region52: #{tpu_custom_call.1} parent=5 // pred_fallthru
        _
    $region6: #{tpu_custom_call.1} parent=1 // loop_footer
      %s21 = sadd.s32 1, %s17
    $region7: #{tpu_custom_call.1} parent=1 // loop_footer_branch
      %16 = sbr.rel target = $region3
    $region8: #{tpu_custom_call.1} parent=1 // loop_exit
      _
    %1522 = vsyncpa [#allocation3], 1
    %s1523 = scalar_lea.sflag [#allocation3], 1
    %1524 = vsyncpa %s1523, 1
    %1525 = vsyncpa [#allocation4], 1
    %s1526 = scalar_lea.sflag [#allocation4], 1
    %1527 = vsyncpa %s1526, 1

</llo_original>
